<compile_context>
chip_gen: v5e
topology: v5e:2x2
jax: 0.10.0
libtpu: 0.0.40
codegen_flags: <defaults>
</compile_context>

<pallas_src>
import functools

import numpy as np
import jax
import jax.numpy as jnp
from jax import lax
from jax.experimental import pallas as pl
from jax.experimental.pallas import tpu as pltpu

_RATES = (1, 6, 12, 18)


# ------------------------------- Pallas kernel -------------------------------

def _aspp_block_kernel(x_ref, band1_ref, sh1_ref, b1_ref, s1_ref, t1_ref,
                       m2_ref, ah_ref, b2_ref, s2_ref, t2_ref, o_ref,
                       *, nb, H, W, Cin, Cout, n_shift):
    """Fully fused ASPP + 1x1 + ReLU + BN + bilinear x2 + 3x3 + ReLU + BN.

    x_ref    : (nb, H, W*Cin)               channel-flattened input rows
    band1_ref: (W*Cin, (1+n_shift)*W*Cout)  concatenated stage-1 band matrices
    sh1_ref  : (n_shift, nb*H, nb*H)        0/1 row-shift matrices (dy != 0 branches)
    m2_ref   : (W*Cout, 3*2W*Cout)          W-interp folded into the 3x3 band matrices
    ah_ref   : (3, nb*2H, nb*H)             row-shifted H-interp matrices
    b*/s*/t* : (1, lanes)                   lane-tiled bias / BN scale / BN shift (f32)
    o_ref    : (nb, 2H, 2W*Cout)            lane-dense output
    """
    cd = band1_ref.dtype
    WCo = W * Cout
    W2Co = 2 * W * Cout
    M1 = nb * H

    x = x_ref[...].reshape(M1, W * Cin)

    # ---- stage 1: 4 dilated 3x3 convs + concat + 1x1, ReLU, BN (all folded) ----
    z1 = jnp.dot(x.astype(cd), band1_ref[...],
                 preferred_element_type=jnp.float32)          # (M1, (1+n_shift)*WCo)
    acc1 = z1[:, :WCo]                                        # merged dy == 0 branches
    for b in range(n_shift):                                  # tiny row-shift matmuls
        acc1 = acc1 + jnp.dot(sh1_ref[b], z1[:, (b + 1) * WCo:(b + 2) * WCo],
                              preferred_element_type=jnp.float32)
    y1 = jnp.maximum(acc1 + b1_ref[...], 0.0) * s1_ref[...] + t1_ref[...]

    # ---- stage 2: bilinear x2 (align_corners=True) + 3x3 conv, ReLU, BN (folded) ----
    z2 = jnp.dot(y1.astype(cd), m2_ref[...],
                 preferred_element_type=jnp.float32)          # (M1, 3*W2Co)
    acc2 = jnp.dot(ah_ref[0], z2[:, :W2Co], preferred_element_type=jnp.float32)
    for ky in range(1, 3):
        acc2 = acc2 + jnp.dot(ah_ref[ky], z2[:, ky * W2Co:(ky + 1) * W2Co],
                              preferred_element_type=jnp.float32)
    out = jnp.maximum(acc2 + b2_ref[...], 0.0) * s2_ref[...] + t2_ref[...]
    o_ref[...] = out.reshape(nb, 2 * H, W2Co).astype(o_ref.dtype)


def _aspp_block_call(xf, prep):
    meta = prep["meta"]
    nb, H, W, Cin, Cout = meta["nb"], meta["H"], meta["W"], meta["Cin"], meta["Cout"]
    N = xf.shape[0]
    assert N % nb == 0, (N, nb)
    n_shift = prep["sh1"].shape[0]
    W2Co = 2 * W * Cout
    kern = functools.partial(_aspp_block_kernel, nb=nb, H=H, W=W, Cin=Cin,
                             Cout=Cout, n_shift=n_shift)
    const2 = lambda n: (0, 0)
    const3 = lambda n: (0, 0, 0)
    return pl.pallas_call(
        kern,
        out_shape=jax.ShapeDtypeStruct((N, 2 * H, W2Co), jnp.float32),
        grid=(N // nb,),
        in_specs=[
            pl.BlockSpec((nb, H, W * Cin), lambda n: (n, 0, 0)),
            pl.BlockSpec(prep["band1"].shape, const2),   # constant block idx -> one DMA
            pl.BlockSpec(prep["sh1"].shape, const3),
            pl.BlockSpec(prep["b1"].shape, const2),
            pl.BlockSpec(prep["s1"].shape, const2),
            pl.BlockSpec(prep["t1"].shape, const2),
            pl.BlockSpec(prep["m2"].shape, const2),
            pl.BlockSpec(prep["ah"].shape, const3),
            pl.BlockSpec(prep["b2"].shape, const2),
            pl.BlockSpec(prep["s2"].shape, const2),
            pl.BlockSpec(prep["t2"].shape, const2),
        ],
        out_specs=pl.BlockSpec((nb, 2 * H, W2Co), lambda n: (n, 0, 0)),
        compiler_params=pltpu.CompilerParams(
            dimension_semantics=("parallel",),     # batch blocks -> both v7x TensorCores
            vmem_limit_bytes=32 * 1024 * 1024,     # explicit budget, fits v5e/v6e/v7x
        ),
    )(xf, prep["band1"], prep["sh1"], prep["b1"], prep["s1"], prep["t1"],
      prep["m2"], prep["ah"], prep["b2"], prep["s2"], prep["t2"])


# ----------------------- constant (weight) precompute -------------------------

def _interp_matrix(n_in, n_out):
    """Row-stochastic A s.t. y = A @ x is 1-D bilinear resize, align_corners=True."""
    a = np.zeros((n_out, n_in), np.float32)
    if n_in == 1 or n_out == 1:
        a[:, 0] = 1.0
        return a
    s = (n_in - 1) / (n_out - 1)
    for i in range(n_out):
        src = i * s
        i0 = min(int(np.floor(src)), n_in - 1)
        i1 = min(i0 + 1, n_in - 1)
        frac = src - i0
        a[i, i0] += 1.0 - frac
        a[i, i1] += frac
    return a


def _row_shift_matrix(n, dy):
    """(n, n) 0/1 matrix S with (S @ x)[i] = x[i + dy] (zero when out of range)."""
    s = np.zeros((n, n), np.float32)
    for i in range(n):
        j = i + dy
        if 0 <= j < n:
            s[i, j] = 1.0
    return s


def _band_matrix(w_tap, rate, W):
    """Fold one conv tap-row (3 kx taps, all channels) into a (W*Ci, W*Co) banded
    matrix acting on a channel-flattened row (lane w*Ci+ci -> w*Co+co).  Out-of-range
    kx taps are dropped, i.e. the W zero-padding halo is baked into the weights and
    the lhs needs no lane halo at all (K == W*Ci exactly)."""
    w_tap = np.asarray(w_tap, np.float32)               # (3, Ci, Co)
    Ci, Co = w_tap.shape[1], w_tap.shape[2]
    m = np.zeros((W * Ci, W * Co), np.float32)
    for kx in range(3):
        shift = (kx - 1) * rate
        e = np.zeros((W, W), np.float32)
        for w in range(W):
            j = w + shift
            if 0 <= j < W:
                e[j, w] = 1.0
        if e.any():
            m += np.kron(e, w_tap[kx])
    return m


def prepare_aspp_block(params, *, H, W, images_per_step=1,
                       compute_dtype=jnp.float32):
    """Host-side (numpy) fold of all module weights into kernel-ready constants."""
    p = {k: np.asarray(v) for k, v in params.items()}
    Cin = p["aspp_w0"].shape[2]
    Cout = p["c1_w"].shape[-1]
    nb = images_per_step
    H2, W2 = 2 * H, 2 * W

    # -- stage 1: fold the 1x1 conv into each branch's 3x3 weights (pure linear) --
    b1 = p["c1_b"].astype(np.float32).copy()
    wc = []
    for i, _ in enumerate(_RATES):
        blk = p["c1_w"][i * Cin:(i + 1) * Cin].astype(np.float32)     # (Cin, Cout)
        wc.append(np.einsum("hwim,mo->hwio", p[f"aspp_w{i}"].astype(np.float32), blk))
        b1 = b1 + p[f"aspp_b{i}"].astype(np.float32) @ blk

    # the four ky==1 branches all have row shift dy == 0 -> pre-sum their bands
    band0 = np.zeros((W * Cin, W * Cout), np.float32)
    for i, r in enumerate(_RATES):
        band0 += _band_matrix(wc[i][1], r, W)
    bands, shifts = [band0], []
    for ky in (0, 2):
        for i, r in enumerate(_RATES):
            dy = (ky - 1) * r
            if abs(dy) >= H:            # row window entirely outside the image
                continue
            bands.append(_band_matrix(wc[i][ky], r, W))
            shifts.append(np.kron(np.eye(nb, dtype=np.float32),
                                  _row_shift_matrix(H, dy)))
    if not shifts:                       # degenerate tiny-H safety
        bands.append(np.zeros_like(band0))
        shifts.append(np.zeros((nb * H, nb * H), np.float32))
    band1 = np.concatenate(bands, axis=1)            # (W*Cin, (1+n_shift)*W*Cout)
    sh1 = np.stack(shifts, axis=0)                   # (n_shift, nb*H, nb*H)

    # -- stage 2: fold W-interp into the 3x3 bands, row shift into the H-interp --
    aw = _interp_matrix(W, W2)                                        # (W2, W)
    bw = np.kron(aw.T, np.eye(Cout, dtype=np.float32))                # (W*Cout, W2*Cout)
    ah = _interp_matrix(H, H2)                                        # (H2, H)
    m2_blk, ah_blk = [], []
    for ky in range(3):
        band2 = _band_matrix(p["c3_w"][ky], 1, W2)                    # (W2*Cout, W2*Cout)
        m2_blk.append(bw @ band2)                                     # (W*Cout, W2*Cout)
        ah_blk.append(np.kron(np.eye(nb, dtype=np.float32),
                              _row_shift_matrix(H2, ky - 1) @ ah))
    m2 = np.concatenate(m2_blk, axis=1)              # (W*Cout, 3*W2*Cout)
    ahs = np.stack(ah_blk, axis=0)                   # (3, nb*H2, nb*H)

    def tile_lanes(v, reps):                         # per-channel -> per-lane (w*C + c)
        return np.tile(np.asarray(v, np.float32).reshape(-1), reps)[None, :]

    cd = compute_dtype
    return dict(
        band1=jnp.asarray(band1, cd),
        sh1=jnp.asarray(sh1, jnp.float32),
        b1=jnp.asarray(tile_lanes(b1, W)),
        s1=jnp.asarray(tile_lanes(p["bn1_scale"], W)),
        t1=jnp.asarray(tile_lanes(p["bn1_shift"], W)),
        m2=jnp.asarray(m2, cd),
        ah=jnp.asarray(ahs, jnp.float32),
        b2=jnp.asarray(tile_lanes(p["c3_b"], W2)),
        s2=jnp.asarray(tile_lanes(p["bn2_scale"], W2)),
        t2=jnp.asarray(tile_lanes(p["bn2_shift"], W2)),
        meta=dict(nb=nb, H=H, W=W, Cin=Cin, Cout=Cout),
    )


# ------------------------------ module forward --------------------------------

def aspp_block_forward(x_nchw, prep):
    """ASPPBlock.forward; input/output NCHW like the PyTorch module."""
    meta = prep["meta"]
    H, W, Cout = meta["H"], meta["W"], meta["Cout"]
    N, Cin = x_nchw.shape[0], x_nchw.shape[1]
    assert (Cin, H, W) == (meta["Cin"], H, W)
    # TODO(synk): fold this NCHW->NHWC transpose (and the inverse on the output) into
    #             the kernel via a channel-major lane order.
    xf = jnp.transpose(x_nchw, (0, 2, 3, 1)).reshape(N, H, W * Cin)
    z = _aspp_block_call(xf, prep)                                 # (N, 2H, 2W*Cout)
    return jnp.transpose(z.reshape(N, 2 * H, 2 * W, Cout), (0, 3, 1, 2))


# ------------------------------ parameters ------------------------------------

def init_params(key, in_ch, out_ch):
    ks = jax.random.split(key, 20)
    p = {}
    for i, _ in enumerate(_RATES):
        p[f"aspp_w{i}"] = 0.1 * jax.random.normal(ks[i], (3, 3, in_ch, in_ch), jnp.float32)
        p[f"aspp_b{i}"] = 0.1 * jax.random.normal(ks[4 + i], (in_ch,), jnp.float32)
    p["c1_w"] = 0.1 * jax.random.normal(ks[8], (4 * in_ch, out_ch), jnp.float32)
    p["c1_b"] = 0.1 * jax.random.normal(ks[9], (out_ch,), jnp.float32)

    def bn_fold(kg, kb, km, kv, c):
        gamma = 1.0 + 0.1 * jax.random.normal(kg, (c,), jnp.float32)
        beta = 0.1 * jax.random.normal(kb, (c,), jnp.float32)
        mean = 0.1 * jax.random.normal(km, (c,), jnp.float32)
        var = 0.5 + jax.random.uniform(kv, (c,), jnp.float32)
        scale = gamma / jnp.sqrt(var + 1e-5)
        shift = beta - mean * scale
        return scale.reshape(1, c), shift.reshape(1, c)

    p["bn1_scale"], p["bn1_shift"] = bn_fold(ks[10], ks[11], ks[12], ks[13], out_ch)
    p["c3_w"] = 0.1 * jax.random.normal(ks[14], (3, 3, out_ch, out_ch), jnp.float32)
    p["c3_b"] = 0.1 * jax.random.normal(ks[15], (out_ch,), jnp.float32)
    p["bn2_scale"], p["bn2_shift"] = bn_fold(ks[16], ks[17], ks[18], ks[19], out_ch)
    return p


# ------------------------------ pure-JAX reference -----------------------------

def _upsample2_bilinear_align_corners(y):
    """Independent (gather+lerp) bilinear x2, align_corners=True, NHWC."""
    N, H, W, C = y.shape
    H2, W2 = 2 * H, 2 * W

    def coords(n_in, n_out):
        if n_in == 1:
            src = jnp.zeros((n_out,), jnp.float32)
        else:
            src = jnp.arange(n_out, dtype=jnp.float32) * (n_in - 1) / (n_out - 1)
        i0 = jnp.clip(jnp.floor(src).astype(jnp.int32), 0, n_in - 1)
        i1 = jnp.minimum(i0 + 1, n_in - 1)
        f = src - i0.astype(jnp.float32)
        return i0, i1, f

    h0, h1, fh = coords(H, H2)
    w0, w1, fw = coords(W, W2)
    yh = (y[:, h0] * (1.0 - fh)[None, :, None, None]
          + y[:, h1] * fh[None, :, None, None])
    yw = (yh[:, :, w0] * (1.0 - fw)[None, None, :, None]
          + yh[:, :, w1] * fw[None, None, :, None])
    return yw


def reference_forward(x_nchw, p):
    x = jnp.transpose(x_nchw, (0, 2, 3, 1))
    dn = ("NHWC", "HWIO", "NHWC")
    feats = []
    for i, r in enumerate(_RATES):
        y = lax.conv_general_dilated(x, p[f"aspp_w{i}"], (1, 1), [(r, r), (r, r)],
                                     rhs_dilation=(r, r), dimension_numbers=dn)
        feats.append(y + p[f"aspp_b{i}"])
    xc = jnp.concatenate(feats, axis=-1)
    y = jnp.einsum("nhwc,co->nhwo", xc, p["c1_w"]) + p["c1_b"]
    y = jnp.maximum(y, 0.0) * p["bn1_scale"] + p["bn1_shift"]
    y = _upsample2_bilinear_align_corners(y)
    z = lax.conv_general_dilated(y, p["c3_w"], (1, 1), [(1, 1), (1, 1)],
                                 dimension_numbers=dn) + p["c3_b"]
    z = jnp.maximum(z, 0.0) * p["bn2_scale"] + p["bn2_shift"]
    return jnp.transpose(z, (0, 3, 1, 2))


# ------------------------------ main --------------------------------------------

if __name__ == "__main__":
    key = jax.random.PRNGKey(0)
    kx_, kp_ = jax.random.split(key)
    in_ch, out_ch = 4, 8
    N, H, W = 2, 16, 16
    x = jax.random.normal(kx_, (N, in_ch, H, W), jnp.float32)     # NCHW, like PyTorch
    params = init_params(kp_, in_ch, out_ch)

    ref = reference_forward(x, params)

    # f32 operand path: same semantics as the module (tight tolerance).
    prep_f32 = prepare_aspp_block(params, H=H, W=W, images_per_step=1,
                                  compute_dtype=jnp.float32)
    fwd_f32 = jax.jit(lambda a: aspp_block_forward(a, prep_f32))
    out = jax.block_until_ready(fwd_f32(x))
    assert out.shape == (N, out_ch, 2 * H, 2 * W), out.shape
    if not jnp.allclose(out, ref, rtol=1e-4, atol=1e-4):
        err = float(jnp.max(jnp.abs(out - ref)))
        raise AssertionError(f"f32 Pallas output mismatch, max abs err {err}")

    # bf16 matmul-operand path (MXU-native on v5e/v6e/v7x; f32 accumulation & epilogue).
    prep_bf16 = prepare_aspp_block(params, H=H, W=W, images_per_step=1,
                                   compute_dtype=jnp.bfloat16)
    fwd_bf16 = jax.jit(lambda a: aspp_block_forward(a, prep_bf16))
    out_bf16 = jax.block_until_ready(fwd_bf16(x))
    if not jnp.allclose(out_bf16, ref, rtol=5e-2, atol=5e-2):
        err = float(jnp.max(jnp.abs(out_bf16 - ref)))
        raise AssertionError(f"bf16 Pallas output mismatch, max abs err {err}")

    print("KERNEL_OK")
</pallas_src>

<mosaic_0001>
module attributes {stable_mosaic.version = 11 : i64} {
  func.func @_aspp_block_kernel(%arg0: i32, %arg1: memref<1x16x64xf32, #tpu.memory_space<vmem>>, %arg2: memref<64x896xf32, #tpu.memory_space<vmem>>, %arg3: memref<6x16x16xf32, #tpu.memory_space<vmem>>, %arg4: memref<1x128xf32, #tpu.memory_space<vmem>>, %arg5: memref<1x128xf32, #tpu.memory_space<vmem>>, %arg6: memref<1x128xf32, #tpu.memory_space<vmem>>, %arg7: memref<128x768xf32, #tpu.memory_space<vmem>>, %arg8: memref<3x32x16xf32, #tpu.memory_space<vmem>>, %arg9: memref<1x256xf32, #tpu.memory_space<vmem>>, %arg10: memref<1x256xf32, #tpu.memory_space<vmem>>, %arg11: memref<1x256xf32, #tpu.memory_space<vmem>>, %arg12: memref<1x32x256xf32, #tpu.memory_space<vmem>>) attributes {dimension_semantics = [#tpu.dimension_semantics<parallel>], iteration_bounds = array<i64: 2>, scalar_prefetch = 0 : i64, scratch_operands = 0 : i64, tpu.core_type = #tpu.core_type<tc>, window_params = [{transform_indices = @transform_0, window_bounds = array<i64: 1, 16, 64>}, {pipeline_mode = #tpu.pipeline_mode<synchronous>, transform_indices = @transform_1, window_bounds = array<i64: 64, 896>}, {pipeline_mode = #tpu.pipeline_mode<synchronous>, transform_indices = @transform_2, window_bounds = array<i64: 6, 16, 16>}, {pipeline_mode = #tpu.pipeline_mode<synchronous>, transform_indices = @transform_3, window_bounds = array<i64: 1, 128>}, {pipeline_mode = #tpu.pipeline_mode<synchronous>, transform_indices = @transform_4, window_bounds = array<i64: 1, 128>}, {pipeline_mode = #tpu.pipeline_mode<synchronous>, transform_indices = @transform_5, window_bounds = array<i64: 1, 128>}, {pipeline_mode = #tpu.pipeline_mode<synchronous>, transform_indices = @transform_6, window_bounds = array<i64: 128, 768>}, {pipeline_mode = #tpu.pipeline_mode<synchronous>, transform_indices = @transform_7, window_bounds = array<i64: 3, 32, 16>}, {pipeline_mode = #tpu.pipeline_mode<synchronous>, transform_indices = @transform_8, window_bounds = array<i64: 1, 256>}, {pipeline_mode = #tpu.pipeline_mode<synchronous>, transform_indices = @transform_9, window_bounds = array<i64: 1, 256>}, {pipeline_mode = #tpu.pipeline_mode<synchronous>, transform_indices = @transform_10, window_bounds = array<i64: 1, 256>}, {transform_indices = @transform_11, window_bounds = array<i64: 1, 32, 256>}]} {
    %c0 = arith.constant 0 : index
    %c0_0 = arith.constant 0 : index
    %c0_1 = arith.constant 0 : index
    %0 = vector.load %arg1[%c0, %c0_0, %c0_1] : memref<1x16x64xf32, #tpu.memory_space<vmem>>, vector<1x16x64xf32>
    %1 = vector.shape_cast %0 : vector<1x16x64xf32> to vector<16x64xf32>
    %c0_2 = arith.constant 0 : index
    %c0_3 = arith.constant 0 : index
    %2 = vector.load %arg2[%c0_2, %c0_3] : memref<64x896xf32, #tpu.memory_space<vmem>>, vector<64x896xf32>
    %cst = arith.constant dense<0.000000e+00> : vector<16x896xf32>
    %3 = tpu.matmul %1, %2, %cst {dimension_numbers = #tpu.dot_dimension_numbers<[1], [0], [0], [1], [0, 0, 1, 1], [], []>} : vector<16x64xf32>, vector<64x896xf32>, vector<16x896xf32> -> vector<16x896xf32>
    %4 = vector.extract_strided_slice %3 {offsets = [0, 0], sizes = [16, 128], strides = [1, 1]} : vector<16x896xf32> to vector<16x128xf32>
    %c0_4 = arith.constant 0 : index
    %c0_5 = arith.constant 0 : index
    %c0_6 = arith.constant 0 : index
    %5 = vector.load %arg3[%c0_4, %c0_5, %c0_6] : memref<6x16x16xf32, #tpu.memory_space<vmem>>, vector<1x16x16xf32>
    %6 = vector.shape_cast %5 : vector<1x16x16xf32> to vector<16x16xf32>
    %7 = vector.extract_strided_slice %3 {offsets = [0, 128], sizes = [16, 128], strides = [1, 1]} : vector<16x896xf32> to vector<16x128xf32>
    %cst_7 = arith.constant dense<0.000000e+00> : vector<16x128xf32>
    %8 = tpu.matmul %6, %7, %cst_7 {dimension_numbers = #tpu.dot_dimension_numbers<[1], [0], [0], [1], [0, 0, 1, 1], [], []>} : vector<16x16xf32>, vector<16x128xf32>, vector<16x128xf32> -> vector<16x128xf32>
    %9 = arith.addf %4, %8 : vector<16x128xf32>
    %c1 = arith.constant 1 : index
    %c0_8 = arith.constant 0 : index
    %c0_9 = arith.constant 0 : index
    %10 = vector.load %arg3[%c1, %c0_8, %c0_9] : memref<6x16x16xf32, #tpu.memory_space<vmem>>, vector<1x16x16xf32>
    %11 = vector.shape_cast %10 : vector<1x16x16xf32> to vector<16x16xf32>
    %12 = vector.extract_strided_slice %3 {offsets = [0, 256], sizes = [16, 128], strides = [1, 1]} : vector<16x896xf32> to vector<16x128xf32>
    %cst_10 = arith.constant dense<0.000000e+00> : vector<16x128xf32>
    %13 = tpu.matmul %11, %12, %cst_10 {dimension_numbers = #tpu.dot_dimension_numbers<[1], [0], [0], [1], [0, 0, 1, 1], [], []>} : vector<16x16xf32>, vector<16x128xf32>, vector<16x128xf32> -> vector<16x128xf32>
    %14 = arith.addf %9, %13 : vector<16x128xf32>
    %c2 = arith.constant 2 : index
    %c0_11 = arith.constant 0 : index
    %c0_12 = arith.constant 0 : index
    %15 = vector.load %arg3[%c2, %c0_11, %c0_12] : memref<6x16x16xf32, #tpu.memory_space<vmem>>, vector<1x16x16xf32>
    %16 = vector.shape_cast %15 : vector<1x16x16xf32> to vector<16x16xf32>
    %17 = vector.extract_strided_slice %3 {offsets = [0, 384], sizes = [16, 128], strides = [1, 1]} : vector<16x896xf32> to vector<16x128xf32>
    %cst_13 = arith.constant dense<0.000000e+00> : vector<16x128xf32>
    %18 = tpu.matmul %16, %17, %cst_13 {dimension_numbers = #tpu.dot_dimension_numbers<[1], [0], [0], [1], [0, 0, 1, 1], [], []>} : vector<16x16xf32>, vector<16x128xf32>, vector<16x128xf32> -> vector<16x128xf32>
    %19 = arith.addf %14, %18 : vector<16x128xf32>
    %c3 = arith.constant 3 : index
    %c0_14 = arith.constant 0 : index
    %c0_15 = arith.constant 0 : index
    %20 = vector.load %arg3[%c3, %c0_14, %c0_15] : memref<6x16x16xf32, #tpu.memory_space<vmem>>, vector<1x16x16xf32>
    %21 = vector.shape_cast %20 : vector<1x16x16xf32> to vector<16x16xf32>
    %22 = vector.extract_strided_slice %3 {offsets = [0, 512], sizes = [16, 128], strides = [1, 1]} : vector<16x896xf32> to vector<16x128xf32>
    %cst_16 = arith.constant dense<0.000000e+00> : vector<16x128xf32>
    %23 = tpu.matmul %21, %22, %cst_16 {dimension_numbers = #tpu.dot_dimension_numbers<[1], [0], [0], [1], [0, 0, 1, 1], [], []>} : vector<16x16xf32>, vector<16x128xf32>, vector<16x128xf32> -> vector<16x128xf32>
    %24 = arith.addf %19, %23 : vector<16x128xf32>
    %c4 = arith.constant 4 : index
    %c0_17 = arith.constant 0 : index
    %c0_18 = arith.constant 0 : index
    %25 = vector.load %arg3[%c4, %c0_17, %c0_18] : memref<6x16x16xf32, #tpu.memory_space<vmem>>, vector<1x16x16xf32>
    %26 = vector.shape_cast %25 : vector<1x16x16xf32> to vector<16x16xf32>
    %27 = vector.extract_strided_slice %3 {offsets = [0, 640], sizes = [16, 128], strides = [1, 1]} : vector<16x896xf32> to vector<16x128xf32>
    %cst_19 = arith.constant dense<0.000000e+00> : vector<16x128xf32>
    %28 = tpu.matmul %26, %27, %cst_19 {dimension_numbers = #tpu.dot_dimension_numbers<[1], [0], [0], [1], [0, 0, 1, 1], [], []>} : vector<16x16xf32>, vector<16x128xf32>, vector<16x128xf32> -> vector<16x128xf32>
    %29 = arith.addf %24, %28 : vector<16x128xf32>
    %c5 = arith.constant 5 : index
    %c0_20 = arith.constant 0 : index
    %c0_21 = arith.constant 0 : index
    %30 = vector.load %arg3[%c5, %c0_20, %c0_21] : memref<6x16x16xf32, #tpu.memory_space<vmem>>, vector<1x16x16xf32>
    %31 = vector.shape_cast %30 : vector<1x16x16xf32> to vector<16x16xf32>
    %32 = vector.extract_strided_slice %3 {offsets = [0, 768], sizes = [16, 128], strides = [1, 1]} : vector<16x896xf32> to vector<16x128xf32>
    %cst_22 = arith.constant dense<0.000000e+00> : vector<16x128xf32>
    %33 = tpu.matmul %31, %32, %cst_22 {dimension_numbers = #tpu.dot_dimension_numbers<[1], [0], [0], [1], [0, 0, 1, 1], [], []>} : vector<16x16xf32>, vector<16x128xf32>, vector<16x128xf32> -> vector<16x128xf32>
    %34 = arith.addf %29, %33 : vector<16x128xf32>
    %c0_23 = arith.constant 0 : index
    %c0_24 = arith.constant 0 : index
    %35 = vector.load %arg4[%c0_23, %c0_24] : memref<1x128xf32, #tpu.memory_space<vmem>>, vector<1x128xf32>
    %36 = vector.broadcast %35 : vector<1x128xf32> to vector<16x128xf32>
    %37 = arith.addf %34, %36 : vector<16x128xf32>
    %cst_25 = arith.constant 0.000000e+00 : f32
    %38 = vector.broadcast %cst_25 : f32 to vector<16x128xf32>
    %39 = arith.maximumf %37, %38 : vector<16x128xf32>
    %c0_26 = arith.constant 0 : index
    %c0_27 = arith.constant 0 : index
    %40 = vector.load %arg5[%c0_26, %c0_27] : memref<1x128xf32, #tpu.memory_space<vmem>>, vector<1x128xf32>
    %41 = vector.broadcast %40 : vector<1x128xf32> to vector<16x128xf32>
    %42 = arith.mulf %39, %41 : vector<16x128xf32>
    %c0_28 = arith.constant 0 : index
    %c0_29 = arith.constant 0 : index
    %43 = vector.load %arg6[%c0_28, %c0_29] : memref<1x128xf32, #tpu.memory_space<vmem>>, vector<1x128xf32>
    %44 = vector.broadcast %43 : vector<1x128xf32> to vector<16x128xf32>
    %45 = arith.addf %42, %44 : vector<16x128xf32>
    %c0_30 = arith.constant 0 : index
    %c0_31 = arith.constant 0 : index
    %46 = vector.load %arg7[%c0_30, %c0_31] : memref<128x768xf32, #tpu.memory_space<vmem>>, vector<128x768xf32>
    %cst_32 = arith.constant dense<0.000000e+00> : vector<16x768xf32>
    %47 = tpu.matmul %45, %46, %cst_32 {dimension_numbers = #tpu.dot_dimension_numbers<[1], [0], [0], [1], [0, 0, 1, 1], [], []>} : vector<16x128xf32>, vector<128x768xf32>, vector<16x768xf32> -> vector<16x768xf32>
    %c0_33 = arith.constant 0 : index
    %c0_34 = arith.constant 0 : index
    %c0_35 = arith.constant 0 : index
    %48 = vector.load %arg8[%c0_33, %c0_34, %c0_35] : memref<3x32x16xf32, #tpu.memory_space<vmem>>, vector<1x32x16xf32>
    %49 = vector.shape_cast %48 : vector<1x32x16xf32> to vector<32x16xf32>
    %50 = vector.extract_strided_slice %47 {offsets = [0, 0], sizes = [16, 256], strides = [1, 1]} : vector<16x768xf32> to vector<16x256xf32>
    %cst_36 = arith.constant dense<0.000000e+00> : vector<32x256xf32>
    %51 = tpu.matmul %49, %50, %cst_36 {dimension_numbers = #tpu.dot_dimension_numbers<[1], [0], [0], [1], [0, 0, 1, 1], [], []>} : vector<32x16xf32>, vector<16x256xf32>, vector<32x256xf32> -> vector<32x256xf32>
    %c1_37 = arith.constant 1 : index
    %c0_38 = arith.constant 0 : index
    %c0_39 = arith.constant 0 : index
    %52 = vector.load %arg8[%c1_37, %c0_38, %c0_39] : memref<3x32x16xf32, #tpu.memory_space<vmem>>, vector<1x32x16xf32>
    %53 = vector.shape_cast %52 : vector<1x32x16xf32> to vector<32x16xf32>
    %54 = vector.extract_strided_slice %47 {offsets = [0, 256], sizes = [16, 256], strides = [1, 1]} : vector<16x768xf32> to vector<16x256xf32>
    %cst_40 = arith.constant dense<0.000000e+00> : vector<32x256xf32>
    %55 = tpu.matmul %53, %54, %cst_40 {dimension_numbers = #tpu.dot_dimension_numbers<[1], [0], [0], [1], [0, 0, 1, 1], [], []>} : vector<32x16xf32>, vector<16x256xf32>, vector<32x256xf32> -> vector<32x256xf32>
    %56 = arith.addf %51, %55 : vector<32x256xf32>
    %c2_41 = arith.constant 2 : index
    %c0_42 = arith.constant 0 : index
    %c0_43 = arith.constant 0 : index
    %57 = vector.load %arg8[%c2_41, %c0_42, %c0_43] : memref<3x32x16xf32, #tpu.memory_space<vmem>>, vector<1x32x16xf32>
    %58 = vector.shape_cast %57 : vector<1x32x16xf32> to vector<32x16xf32>
    %59 = vector.extract_strided_slice %47 {offsets = [0, 512], sizes = [16, 256], strides = [1, 1]} : vector<16x768xf32> to vector<16x256xf32>
    %cst_44 = arith.constant dense<0.000000e+00> : vector<32x256xf32>
    %60 = tpu.matmul %58, %59, %cst_44 {dimension_numbers = #tpu.dot_dimension_numbers<[1], [0], [0], [1], [0, 0, 1, 1], [], []>} : vector<32x16xf32>, vector<16x256xf32>, vector<32x256xf32> -> vector<32x256xf32>
    %61 = arith.addf %56, %60 : vector<32x256xf32>
    %c0_45 = arith.constant 0 : index
    %c0_46 = arith.constant 0 : index
    %62 = vector.load %arg9[%c0_45, %c0_46] : memref<1x256xf32, #tpu.memory_space<vmem>>, vector<1x256xf32>
    %63 = vector.broadcast %62 : vector<1x256xf32> to vector<32x256xf32>
    %64 = arith.addf %61, %63 : vector<32x256xf32>
    %cst_47 = arith.constant 0.000000e+00 : f32
    %65 = vector.broadcast %cst_47 : f32 to vector<32x256xf32>
    %66 = arith.maximumf %64, %65 : vector<32x256xf32>
    %c0_48 = arith.constant 0 : index
    %c0_49 = arith.constant 0 : index
    %67 = vector.load %arg10[%c0_48, %c0_49] : memref<1x256xf32, #tpu.memory_space<vmem>>, vector<1x256xf32>
    %68 = vector.broadcast %67 : vector<1x256xf32> to vector<32x256xf32>
    %69 = arith.mulf %66, %68 : vector<32x256xf32>
    %c0_50 = arith.constant 0 : index
    %c0_51 = arith.constant 0 : index
    %70 = vector.load %arg11[%c0_50, %c0_51] : memref<1x256xf32, #tpu.memory_space<vmem>>, vector<1x256xf32>
    %71 = vector.broadcast %70 : vector<1x256xf32> to vector<32x256xf32>
    %72 = arith.addf %69, %71 : vector<32x256xf32>
    %73 = vector.shape_cast %72 : vector<32x256xf32> to vector<1x32x256xf32>
    %c0_52 = arith.constant 0 : index
    %c0_53 = arith.constant 0 : index
    %c0_54 = arith.constant 0 : index
    %74 = vector.load %arg12[%c0_52, %c0_53, %c0_54] : memref<1x32x256xf32, #tpu.memory_space<vmem>>, vector<1x32x256xf32>
    tpu.vector_store %arg12[%c0_52, %c0_53, %c0_54], %73 {strides = array<i32>} : memref<1x32x256xf32, #tpu.memory_space<vmem>>, vector<1x32x256xf32>,
    return
  }
  func.func @transform_0(%arg0: i32) -> (i32, i32, i32) {
    %c0_i32 = arith.constant 0 : i32
    %c0_i32_0 = arith.constant 0 : i32
    %c0_i32_1 = arith.constant 0 : i32
    return %arg0, %c0_i32, %c0_i32_0 : i32, i32, i32
  }
  func.func @transform_1(%arg0: i32) -> (i32, i32) {
    %c0_i32 = arith.constant 0 : i32
    %c0_i32_0 = arith.constant 0 : i32
    %c0_i32_1 = arith.constant 0 : i32
    return %c0_i32, %c0_i32_0 : i32, i32
  }
  func.func @transform_2(%arg0: i32) -> (i32, i32, i32) {
    %c0_i32 = arith.constant 0 : i32
    %c0_i32_0 = arith.constant 0 : i32
    %c0_i32_1 = arith.constant 0 : i32
    %c0_i32_2 = arith.constant 0 : i32
    return %c0_i32, %c0_i32_0, %c0_i32_1 : i32, i32, i32
  }
  func.func @transform_3(%arg0: i32) -> (i32, i32) {
    %c0_i32 = arith.constant 0 : i32
    %c0_i32_0 = arith.constant 0 : i32
    %c0_i32_1 = arith.constant 0 : i32
    return %c0_i32, %c0_i32_0 : i32, i32
  }
  func.func @transform_4(%arg0: i32) -> (i32, i32) {
    %c0_i32 = arith.constant 0 : i32
    %c0_i32_0 = arith.constant 0 : i32
    %c0_i32_1 = arith.constant 0 : i32
    return %c0_i32, %c0_i32_0 : i32, i32
  }
  func.func @transform_5(%arg0: i32) -> (i32, i32) {
    %c0_i32 = arith.constant 0 : i32
    %c0_i32_0 = arith.constant 0 : i32
    %c0_i32_1 = arith.constant 0 : i32
    return %c0_i32, %c0_i32_0 : i32, i32
  }
  func.func @transform_6(%arg0: i32) -> (i32, i32) {
    %c0_i32 = arith.constant 0 : i32
    %c0_i32_0 = arith.constant 0 : i32
    %c0_i32_1 = arith.constant 0 : i32
    return %c0_i32, %c0_i32_0 : i32, i32
  }
  func.func @transform_7(%arg0: i32) -> (i32, i32, i32) {
    %c0_i32 = arith.constant 0 : i32
    %c0_i32_0 = arith.constant 0 : i32
    %c0_i32_1 = arith.constant 0 : i32
    %c0_i32_2 = arith.constant 0 : i32
    return %c0_i32, %c0_i32_0, %c0_i32_1 : i32, i32, i32
  }
  func.func @transform_8(%arg0: i32) -> (i32, i32) {
    %c0_i32 = arith.constant 0 : i32
    %c0_i32_0 = arith.constant 0 : i32
    %c0_i32_1 = arith.constant 0 : i32
    return %c0_i32, %c0_i32_0 : i32, i32
  }
  func.func @transform_9(%arg0: i32) -> (i32, i32) {
    %c0_i32 = arith.constant 0 : i32
    %c0_i32_0 = arith.constant 0 : i32
    %c0_i32_1 = arith.constant 0 : i32
    return %c0_i32, %c0_i32_0 : i32, i32
  }
  func.func @transform_10(%arg0: i32) -> (i32, i32) {
    %c0_i32 = arith.constant 0 : i32
    %c0_i32_0 = arith.constant 0 : i32
    %c0_i32_1 = arith.constant 0 : i32
    return %c0_i32, %c0_i32_0 : i32, i32
  }
  func.func @transform_11(%arg0: i32) -> (i32, i32, i32) {
    %c0_i32 = arith.constant 0 : i32
    %c0_i32_0 = arith.constant 0 : i32
    %c0_i32_1 = arith.constant 0 : i32
    return %arg0, %c0_i32, %c0_i32_0 : i32, i32, i32
  }
}

</mosaic_0001>

<llo_original>
// kernel: _lambda_.1
$region0: #{_lambda_.1}
  #allocation0 [shape = 'u32[]', space=smem, size = 0x4, offset = 0x4, fixed_abs, tag = 'smem constant byte address 0x4 - core index']
  #allocation1 [shape = 'u32[72,128]{1,0:T(1,128)}', space=vmem, size = 0x9000, scoped, tag = 'internal scratch']
  %s0 = inlined_call_operand.vmem [shape: f32[2,16,64], index: 0, kind: input, shape index: {}]
  %s1 = inlined_call_operand.hbm [shape: f32[64,896], index: 1, kind: input, shape index: {}]
  %s2 = inlined_call_operand.vmem [shape: f32[6,16,16], index: 2, kind: input, shape index: {}]
  %s3 = inlined_call_operand.vmem [shape: f32[1,128], index: 3, kind: input, shape index: {}]
  %s4 = inlined_call_operand.vmem [shape: f32[1,128], index: 4, kind: input, shape index: {}]
  %s5 = inlined_call_operand.vmem [shape: f32[1,128], index: 5, kind: input, shape index: {}]
  %s6 = inlined_call_operand.hbm [shape: f32[128,768], index: 6, kind: input, shape index: {}]
  %s7 = inlined_call_operand.vmem [shape: f32[3,32,16], index: 7, kind: input, shape index: {}]
  %s8 = inlined_call_operand.vmem [shape: f32[1,256], index: 8, kind: input, shape index: {}]
  %s9 = inlined_call_operand.vmem [shape: f32[1,256], index: 9, kind: input, shape index: {}]
  %s10 = inlined_call_operand.vmem [shape: f32[1,256], index: 10, kind: input, shape index: {}]
  %s11 = inlined_call_operand.vmem [shape: f32[2,32,256], index: 11, kind: output, shape index: {}]
  %s12 = sld [smem:[#allocation0]]
  $region85: #{_lambda_.1} parent=0
    _
  %s14 = ssub.s32 1, %s12
  %s15 = scalar_select 0, %s14, %s12
  $region1: #{_lambda_.1} parent=0
    #allocation2 [shape = 'u8[229376]{0}', space=vmem, size = 0x38000, scoped, tag = 'input window, operand 1, single buffered']
    #allocation3 [shape = 's32[2]{0}', space=sflag, size = 0x8, scoped, tag = 'scoped memory for _lambda_.1']
    #allocation4 [shape = 'u8[393216]{0}', space=vmem, size = 0x60000, scoped, tag = 'input window, operand 6, single buffered']
    #allocation5 [shape = 's32[1]{0}', space=sflag, size = 0x4, scoped, tag = 'scoped memory for _lambda_.1']
    %16 = vsyncpa [#allocation3], 0
    %17 = vsyncpa [#allocation5], 0
    loop: start=0, step=1, limit=4
    $region2: #{_lambda_.1} parent=1 // loop_pre_header
      _
    $region3: #{_lambda_.1} parent=1 // loop_header
      %s19 = sphi 0, %s23
      %p20 = scmp.ge.s32.totalorder %s19, 4
      %s29 = sphi 0, %s31
      %s32 = sphi 0, %s29
      %s33 = sphi 0, %s32
      %s49 = sphi 0, %s33
      %s53 = sphi 0, %s53
      %s55 = sphi 0, %s53
      %s56 = sphi 0, %s55
      %s70 = sphi 0, %s56
      %s74 = sphi 0, %s74
      %s76 = sphi 0, %s74
      %s77 = sphi 0, %s76
      %s91 = sphi 0, %s77
      %s95 = sphi 0, %s95
      %s97 = sphi 0, %s95
      %s98 = sphi 0, %s97
      %s112 = sphi 0, %s98
      %s116 = sphi 0, %s116
      %s118 = sphi 0, %s116
      %s119 = sphi 0, %s118
      %s133 = sphi 0, %s119
      %s137 = sphi 0, %s137
      %s139 = sphi 0, %s137
      %s140 = sphi 0, %s139
      %s154 = sphi 0, %s140
      %s158 = sphi 0, %s158
      %s160 = sphi 0, %s158
      %s161 = sphi 0, %s160
      %s175 = sphi 0, %s161
      %s179 = sphi 0, %s179
      %s181 = sphi 0, %s179
      %s182 = sphi 0, %s181
      %s196 = sphi 0, %s182
      %s200 = sphi 0, %s200
      %s202 = sphi 0, %s200
      %s203 = sphi 0, %s202
      %s217 = sphi 0, %s203
      %s221 = sphi 0, %s221
      %s223 = sphi 0, %s221
      %s224 = sphi 0, %s223
      %s238 = sphi 0, %s224
      %s242 = sphi 0, %s242
      %s244 = sphi 0, %s242
      %s245 = sphi 0, %s244
      %s259 = sphi 0, %s245
      %s265 = sphi 0, %s267
      %s268 = sphi 0, %s265
      %s269 = sphi 0, %s268
      %s285 = sphi 0, %s269
    $region4: #{_lambda_.1} parent=1 // loop_header_branch
      %22 = sbr.rel (%p20) target = $region8
    $region5: #{_lambda_.1} parent=1 // loop_body
      %s24 = ssub.s32 %s19, 1
      %s25 = ssub.s32 %s19, 2
      %s26 = sadd.s32 %s19, 1
      %s27 = ssub.s32 %s19, %s26
      %p28 = scmp.eq.s32.totalorder %s27, 0
      %s30 = sadd.s32 %s29, 1
      %s31 = scalar_select %p28, %s29, %s30
      %p34 = pneg %p28
      %p35 = scmp.eq.s32.totalorder %s19, 1
      %p36 = por %p34, %p35
      %p37 = scmp.ne.s32.totalorder %s29, %s32
      %p38 = scmp.eq.s32.totalorder %s19, 0
      %p39 = por %p37, %p38
      %p40 = scmp.ne.s32.totalorder %s29, %s32
      %p41 = scmp.eq.s32.totalorder %s24, 1
      %p42 = por %p40, %p41
      %p43 = scmp.ne.s32.totalorder %s32, %s33
      %p44 = scmp.eq.s32.totalorder %s24, 0
      %p45 = por %p43, %p44
      %p46 = scmp.ne.s32.totalorder %s32, %s33
      %p47 = scmp.eq.s32.totalorder %s25, 1
      %p48 = por %p46, %p47
      %p50 = scmp.ne.s32.totalorder %s33, %s49
      %p51 = scmp.eq.s32.totalorder %s25, 0
      %p52 = por %p50, %p51
      %s54 = sadd.s32 %s53, 1
      %p57 = scmp.eq.s32.totalorder %s19, 1
      %p58 = scmp.ne.s32.totalorder %s53, %s55
      %p59 = scmp.eq.s32.totalorder %s19, 0
      %p60 = por %p58, %p59
      %p61 = scmp.ne.s32.totalorder %s53, %s55
      %p62 = scmp.eq.s32.totalorder %s24, 1
      %p63 = por %p61, %p62
      %p64 = scmp.ne.s32.totalorder %s55, %s56
      %p65 = scmp.eq.s32.totalorder %s24, 0
      %p66 = por %p64, %p65
      %p67 = scmp.ne.s32.totalorder %s55, %s56
      %p68 = scmp.eq.s32.totalorder %s25, 1
      %p69 = por %p67, %p68
      %p71 = scmp.ne.s32.totalorder %s56, %s70
      %p72 = scmp.eq.s32.totalorder %s25, 0
      %p73 = por %p71, %p72
      %s75 = sadd.s32 %s74, 1
      %p78 = scmp.eq.s32.totalorder %s19, 1
      %p79 = scmp.ne.s32.totalorder %s74, %s76
      %p80 = scmp.eq.s32.totalorder %s19, 0
      %p81 = por %p79, %p80
      %p82 = scmp.ne.s32.totalorder %s74, %s76
      %p83 = scmp.eq.s32.totalorder %s24, 1
      %p84 = por %p82, %p83
      %p85 = scmp.ne.s32.totalorder %s76, %s77
      %p86 = scmp.eq.s32.totalorder %s24, 0
      %p87 = por %p85, %p86
      %p88 = scmp.ne.s32.totalorder %s76, %s77
      %p89 = scmp.eq.s32.totalorder %s25, 1
      %p90 = por %p88, %p89
      %p92 = scmp.ne.s32.totalorder %s77, %s91
      %p93 = scmp.eq.s32.totalorder %s25, 0
      %p94 = por %p92, %p93
      %s96 = sadd.s32 %s95, 1
      %p99 = scmp.eq.s32.totalorder %s19, 1
      %p100 = scmp.ne.s32.totalorder %s95, %s97
      %p101 = scmp.eq.s32.totalorder %s19, 0
      %p102 = por %p100, %p101
      %p103 = scmp.ne.s32.totalorder %s95, %s97
      %p104 = scmp.eq.s32.totalorder %s24, 1
      %p105 = por %p103, %p104
      %p106 = scmp.ne.s32.totalorder %s97, %s98
      %p107 = scmp.eq.s32.totalorder %s24, 0
      %p108 = por %p106, %p107
      %p109 = scmp.ne.s32.totalorder %s97, %s98
      %p110 = scmp.eq.s32.totalorder %s25, 1
      %p111 = por %p109, %p110
      %p113 = scmp.ne.s32.totalorder %s98, %s112
      %p114 = scmp.eq.s32.totalorder %s25, 0
      %p115 = por %p113, %p114
      %s117 = sadd.s32 %s116, 1
      %p120 = scmp.eq.s32.totalorder %s19, 1
      %p121 = scmp.ne.s32.totalorder %s116, %s118
      %p122 = scmp.eq.s32.totalorder %s19, 0
      %p123 = por %p121, %p122
      %p124 = scmp.ne.s32.totalorder %s116, %s118
      %p125 = scmp.eq.s32.totalorder %s24, 1
      %p126 = por %p124, %p125
      %p127 = scmp.ne.s32.totalorder %s118, %s119
      %p128 = scmp.eq.s32.totalorder %s24, 0
      %p129 = por %p127, %p128
      %p130 = scmp.ne.s32.totalorder %s118, %s119
      %p131 = scmp.eq.s32.totalorder %s25, 1
      %p132 = por %p130, %p131
      %p134 = scmp.ne.s32.totalorder %s119, %s133
      %p135 = scmp.eq.s32.totalorder %s25, 0
      %p136 = por %p134, %p135
      %s138 = sadd.s32 %s137, 1
      %p141 = scmp.eq.s32.totalorder %s19, 1
      %p142 = scmp.ne.s32.totalorder %s137, %s139
      %p143 = scmp.eq.s32.totalorder %s19, 0
      %p144 = por %p142, %p143
      %p145 = scmp.ne.s32.totalorder %s137, %s139
      %p146 = scmp.eq.s32.totalorder %s24, 1
      %p147 = por %p145, %p146
      %p148 = scmp.ne.s32.totalorder %s139, %s140
      %p149 = scmp.eq.s32.totalorder %s24, 0
      %p150 = por %p148, %p149
      %p151 = scmp.ne.s32.totalorder %s139, %s140
      %p152 = scmp.eq.s32.totalorder %s25, 1
      %p153 = por %p151, %p152
      %p155 = scmp.ne.s32.totalorder %s140, %s154
      %p156 = scmp.eq.s32.totalorder %s25, 0
      %p157 = por %p155, %p156
      %s159 = sadd.s32 %s158, 1
      %p162 = scmp.eq.s32.totalorder %s19, 1
      %p163 = scmp.ne.s32.totalorder %s158, %s160
      %p164 = scmp.eq.s32.totalorder %s19, 0
      %p165 = por %p163, %p164
      %p166 = scmp.ne.s32.totalorder %s158, %s160
      %p167 = scmp.eq.s32.totalorder %s24, 1
      %p168 = por %p166, %p167
      %p169 = scmp.ne.s32.totalorder %s160, %s161
      %p170 = scmp.eq.s32.totalorder %s24, 0
      %p171 = por %p169, %p170
      %p172 = scmp.ne.s32.totalorder %s160, %s161
      %p173 = scmp.eq.s32.totalorder %s25, 1
      %p174 = por %p172, %p173
      %p176 = scmp.ne.s32.totalorder %s161, %s175
      %p177 = scmp.eq.s32.totalorder %s25, 0
      %p178 = por %p176, %p177
      %s180 = sadd.s32 %s179, 1
      %p183 = scmp.eq.s32.totalorder %s19, 1
      %p184 = scmp.ne.s32.totalorder %s179, %s181
      %p185 = scmp.eq.s32.totalorder %s19, 0
      %p186 = por %p184, %p185
      %p187 = scmp.ne.s32.totalorder %s179, %s181
      %p188 = scmp.eq.s32.totalorder %s24, 1
      %p189 = por %p187, %p188
      %p190 = scmp.ne.s32.totalorder %s181, %s182
      %p191 = scmp.eq.s32.totalorder %s24, 0
      %p192 = por %p190, %p191
      %p193 = scmp.ne.s32.totalorder %s181, %s182
      %p194 = scmp.eq.s32.totalorder %s25, 1
      %p195 = por %p193, %p194
      %p197 = scmp.ne.s32.totalorder %s182, %s196
      %p198 = scmp.eq.s32.totalorder %s25, 0
      %p199 = por %p197, %p198
      %s201 = sadd.s32 %s200, 1
      %p204 = scmp.eq.s32.totalorder %s19, 1
      %p205 = scmp.ne.s32.totalorder %s200, %s202
      %p206 = scmp.eq.s32.totalorder %s19, 0
      %p207 = por %p205, %p206
      %p208 = scmp.ne.s32.totalorder %s200, %s202
      %p209 = scmp.eq.s32.totalorder %s24, 1
      %p210 = por %p208, %p209
      %p211 = scmp.ne.s32.totalorder %s202, %s203
      %p212 = scmp.eq.s32.totalorder %s24, 0
      %p213 = por %p211, %p212
      %p214 = scmp.ne.s32.totalorder %s202, %s203
      %p215 = scmp.eq.s32.totalorder %s25, 1
      %p216 = por %p214, %p215
      %p218 = scmp.ne.s32.totalorder %s203, %s217
      %p219 = scmp.eq.s32.totalorder %s25, 0
      %p220 = por %p218, %p219
      %s222 = sadd.s32 %s221, 1
      %p225 = scmp.eq.s32.totalorder %s19, 1
      %p226 = scmp.ne.s32.totalorder %s221, %s223
      %p227 = scmp.eq.s32.totalorder %s19, 0
      %p228 = por %p226, %p227
      %p229 = scmp.ne.s32.totalorder %s221, %s223
      %p230 = scmp.eq.s32.totalorder %s24, 1
      %p231 = por %p229, %p230
      %p232 = scmp.ne.s32.totalorder %s223, %s224
      %p233 = scmp.eq.s32.totalorder %s24, 0
      %p234 = por %p232, %p233
      %p235 = scmp.ne.s32.totalorder %s223, %s224
      %p236 = scmp.eq.s32.totalorder %s25, 1
      %p237 = por %p235, %p236
      %p239 = scmp.ne.s32.totalorder %s224, %s238
      %p240 = scmp.eq.s32.totalorder %s25, 0
      %p241 = por %p239, %p240
      %s243 = sadd.s32 %s242, 1
      %p246 = scmp.eq.s32.totalorder %s19, 1
      %p247 = scmp.ne.s32.totalorder %s242, %s244
      %p248 = scmp.eq.s32.totalorder %s19, 0
      %p249 = por %p247, %p248
      %p250 = scmp.ne.s32.totalorder %s242, %s244
      %p251 = scmp.eq.s32.totalorder %s24, 1
      %p252 = por %p250, %p251
      %p253 = scmp.ne.s32.totalorder %s244, %s245
      %p254 = scmp.eq.s32.totalorder %s24, 0
      %p255 = por %p253, %p254
      %p256 = scmp.ne.s32.totalorder %s244, %s245
      %p257 = scmp.eq.s32.totalorder %s25, 1
      %p258 = por %p256, %p257
      %p260 = scmp.ne.s32.totalorder %s245, %s259
      %p261 = scmp.eq.s32.totalorder %s25, 0
      %p262 = por %p260, %p261
      %s263 = ssub.s32 %s19, %s26
      %p264 = scmp.eq.s32.totalorder %s263, 0
      %s266 = sadd.s32 %s265, 1
      %s267 = scalar_select %p264, %s265, %s266
      %p270 = pneg %p264
      %p271 = scmp.eq.s32.totalorder %s19, 1
      %p272 = por %p270, %p271
      %p273 = scmp.ne.s32.totalorder %s265, %s268
      %p274 = scmp.eq.s32.totalorder %s19, 0
      %p275 = por %p273, %p274
      %p276 = scmp.ne.s32.totalorder %s265, %s268
      %p277 = scmp.eq.s32.totalorder %s24, 1
      %p278 = por %p276, %p277
      %p279 = scmp.ne.s32.totalorder %s268, %s269
      %p280 = scmp.eq.s32.totalorder %s24, 0
      %p281 = por %p279, %p280
      %p282 = scmp.ne.s32.totalorder %s268, %s269
      %p283 = scmp.eq.s32.totalorder %s25, 1
      %p284 = por %p282, %p283
      %p286 = scmp.ne.s32.totalorder %s269, %s285
      %p287 = scmp.eq.s32.totalorder %s25, 0
      %p288 = por %p286, %p287
      %p289 = scmp.le.s32.totalorder 1, %s19
      %p290 = scmp.lt.s32.totalorder %s19, 3
      %p291 = pnand %p289, %p290
      %p292 = pneg %p291
      // Predicated region
      $region9: #{_lambda_.1} parent=5 // pred_check
        _
      $region10: #{_lambda_.1} parent=5 // pred_check_branch
        %294 = sbr.rel (%p291) target = $region12
      $region11: #{_lambda_.1} parent=5 // pred_region
        %s295 = ssub.s32 %s19, 1
        // Predicated region
        $region13: #{_lambda_.1} parent=11 // pred_check
          %p296 = pneg %p66
        $region14: #{_lambda_.1} parent=11 // pred_check_branch
          %298 = sbr.rel (%p296) target = $region16
        $region15: #{_lambda_.1} parent=11 // pred_region
          %300 = vsyncadd [#allocation3], 0
          %s301 = sshll.u32 %s1, 4
          %s302 = int_to_ptr.hbm [resolvable:$true] %s301
          %s303 = sshll.u32 [#allocation2], 4
          %s304 = int_to_ptr.vmem [resolvable:$true] %s303
          %309 = dma.hbm_to_vmem [thread:$0]  %s302, 7168, %s304, [#allocation3], 896, 896, 56
        $region16: #{_lambda_.1} parent=11 // pred_fallthru
          _
        // Predicated region
        $region17: #{_lambda_.1} parent=11 // pred_check
          %p310 = pneg %p87
        $region18: #{_lambda_.1} parent=11 // pred_check_branch
          %312 = sbr.rel (%p310) target = $region20
        $region19: #{_lambda_.1} parent=11 // pred_region
          _
        $region20: #{_lambda_.1} parent=11 // pred_fallthru
          _
        // Predicated region
        $region21: #{_lambda_.1} parent=11 // pred_check
          %p313 = pneg %p108
        $region22: #{_lambda_.1} parent=11 // pred_check_branch
          %315 = sbr.rel (%p313) target = $region24
        $region23: #{_lambda_.1} parent=11 // pred_region
          _
        $region24: #{_lambda_.1} parent=11 // pred_fallthru
          _
        // Predicated region
        $region25: #{_lambda_.1} parent=11 // pred_check
          %p316 = pneg %p129
        $region26: #{_lambda_.1} parent=11 // pred_check_branch
          %318 = sbr.rel (%p316) target = $region28
        $region27: #{_lambda_.1} parent=11 // pred_region
          _
        $region28: #{_lambda_.1} parent=11 // pred_fallthru
          _
        // Predicated region
        $region29: #{_lambda_.1} parent=11 // pred_check
          %p319 = pneg %p150
        $region30: #{_lambda_.1} parent=11 // pred_check_branch
          %321 = sbr.rel (%p319) target = $region32
        $region31: #{_lambda_.1} parent=11 // pred_region
          _
        $region32: #{_lambda_.1} parent=11 // pred_fallthru
          _
        // Predicated region
        $region33: #{_lambda_.1} parent=11 // pred_check
          %p322 = pneg %p171
        $region34: #{_lambda_.1} parent=11 // pred_check_branch
          %324 = sbr.rel (%p322) target = $region36
        $region35: #{_lambda_.1} parent=11 // pred_region
          %326 = vsyncadd [#allocation5], 0
          %s327 = sshll.u32 %s6, 4
          %s328 = int_to_ptr.hbm [resolvable:$true] %s327
          %s329 = sshll.u32 [#allocation4], 4
          %s330 = int_to_ptr.vmem [resolvable:$true] %s329
          %335 = dma.hbm_to_vmem [thread:$0]  %s328, 12288, %s330, [#allocation5], 768, 768, 48
        $region36: #{_lambda_.1} parent=11 // pred_fallthru
          _
        // Predicated region
        $region37: #{_lambda_.1} parent=11 // pred_check
          %p336 = pneg %p192
        $region38: #{_lambda_.1} parent=11 // pred_check_branch
          %338 = sbr.rel (%p336) target = $region40
        $region39: #{_lambda_.1} parent=11 // pred_region
          _
        $region40: #{_lambda_.1} parent=11 // pred_fallthru
          _
        // Predicated region
        $region41: #{_lambda_.1} parent=11 // pred_check
          %p339 = pneg %p213
        $region42: #{_lambda_.1} parent=11 // pred_check_branch
          %341 = sbr.rel (%p339) target = $region44
        $region43: #{_lambda_.1} parent=11 // pred_region
          _
        $region44: #{_lambda_.1} parent=11 // pred_fallthru
          _
        // Predicated region
        $region45: #{_lambda_.1} parent=11 // pred_check
          %p342 = pneg %p234
        $region46: #{_lambda_.1} parent=11 // pred_check_branch
          %344 = sbr.rel (%p342) target = $region48
        $region47: #{_lambda_.1} parent=11 // pred_region
          _
        $region48: #{_lambda_.1} parent=11 // pred_fallthru
          _
        // Predicated region
        $region49: #{_lambda_.1} parent=11 // pred_check
          %p345 = pneg %p255
        $region50: #{_lambda_.1} parent=11 // pred_check_branch
          %347 = sbr.rel (%p345) target = $region52
        $region51: #{_lambda_.1} parent=11 // pred_region
          _
        $region52: #{_lambda_.1} parent=11 // pred_fallthru
          _
      $region12: #{_lambda_.1} parent=5 // pred_fallthru
        _
      %p348 = scmp.lt.s32.totalorder %s19, 2
      // Predicated region
      $region53: #{_lambda_.1} parent=5 // pred_check
        %p349 = pneg %p348
      $region54: #{_lambda_.1} parent=5 // pred_check_branch
        %351 = sbr.rel (%p349) target = $region56
      $region55: #{_lambda_.1} parent=5 // pred_region
        // Predicated region
        $region57: #{_lambda_.1} parent=55 // pred_check
          %p352 = pneg %p39
        $region58: #{_lambda_.1} parent=55 // pred_check_branch
          %354 = sbr.rel (%p352) target = $region60
        $region59: #{_lambda_.1} parent=55 // pred_region
          %p355 = scmp.lt.s32.totalorder %s19, 1
          %s356 = scalar_select %p355, %s19, 1
          %s357 = smul.addr %s356, 2
          %s358 = smul.addr %s357, 8
          %s359 = scalar_lea.vmem %s0, %s358
        $region60: #{_lambda_.1} parent=55 // pred_fallthru
          _
      $region56: #{_lambda_.1} parent=5 // pred_fallthru
        _
      %p360 = scmp.le.s32.totalorder 1, %s19
      %p361 = scmp.lt.s32.totalorder %s19, 3
      %p362 = pnand %p360, %p361
      %p363 = pneg %p362
      // Predicated region
      $region61: #{_lambda_.1} parent=5 // pred_check
        _
      $region62: #{_lambda_.1} parent=5 // pred_check_branch
        %365 = sbr.rel (%p362) target = $region64
      $region63: #{_lambda_.1} parent=5 // pred_region
        %s366 = ssub.s32 %s19, 1
        // Predicated region
        $region65: #{_lambda_.1} parent=63 // pred_check
          %p367 = pneg %p66
        $region66: #{_lambda_.1} parent=63 // pred_check_branch
          %369 = sbr.rel (%p367) target = $region68
        $region67: #{_lambda_.1} parent=63 // pred_region
          %371 = dma.done [#allocation3], 7168
        $region68: #{_lambda_.1} parent=63 // pred_fallthru
          _
        // Predicated region
        $region69: #{_lambda_.1} parent=63 // pred_check
          %p372 = pneg %p171
        $region70: #{_lambda_.1} parent=63 // pred_check_branch
          %374 = sbr.rel (%p372) target = $region72
        $region71: #{_lambda_.1} parent=63 // pred_region
          %376 = dma.done [#allocation5], 12288
        $region72: #{_lambda_.1} parent=63 // pred_fallthru
          _
        %p377 = scmp.lt.s32.totalorder %s24, 1
        %s378 = scalar_select %p377, %s24, 1
        %s379 = smul.addr %s378, 2
        %s380 = smul.addr %s379, 8
        %s381 = scalar_lea.vmem %s0, %s380
        %p382 = pneg %p45
        %p383 = pneg %p42
        %p384 = pneg %p66
        %p385 = pneg %p63
        %p386 = pneg %p87
        %p387 = pneg %p84
        %p388 = pneg %p108
        %p389 = pneg %p105
        %p390 = pneg %p129
        %p391 = pneg %p126
        %p392 = pneg %p150
        %p393 = pneg %p147
        %p394 = pneg %p171
        %p395 = pneg %p168
        %p396 = pneg %p192
        %p397 = pneg %p189
        %p398 = pneg %p213
        %p399 = pneg %p210
        %p400 = pneg %p234
        %p401 = pneg %p231
        %p402 = pneg %p255
        %p403 = pneg %p252
        %p404 = pneg %p281
        %p405 = pneg %p278
        %p406 = scmp.lt.s32.totalorder %s24, 1
        %s407 = scalar_select %p406, %s24, 1
        %s408 = smul.addr %s407, 8
        %s409 = smul.addr %s408, 8
        %s410 = scalar_lea.vmem %s11, %s409
        %p411 = scmp.lt.s32.totalorder %s24, 1
        %s412 = scalar_select %p411, %s24, 1
        %s413 = smul.addr %s412, 2
        %s414 = smul.addr %s413, 8
        %s415 = scalar_lea.vmem %s0, %s414
        %p416 = scmp.lt.s32.totalorder %s24, 1
        %s417 = scalar_select %p416, %s24, 1
        %s418 = smul.addr %s417, 8
        %s419 = smul.addr %s418, 8
        %s420 = scalar_lea.vmem %s11, %s419
        %v421 = vld [vmem:[%s415] sm:$0xff]
        %v422 = vld [vmem:[%s415 + $0x8] sm:$0xff]
        %v423 = vld [vmem:[#allocation2] sm:$0xff]
        %v424 = vld [vmem:[#allocation2 + $0x8] sm:$0xff]
        %v425 = vld [vmem:[#allocation2 + $0x10] sm:$0xff]
        %v426 = vld [vmem:[#allocation2 + $0x18] sm:$0xff]
        %v427 = vld [vmem:[#allocation2 + $0x20] sm:$0xff]
        %v428 = vld [vmem:[#allocation2 + $0x28] sm:$0xff]
        %v429 = vld [vmem:[#allocation2 + $0x30] sm:$0xff]
        %v430 = vld [vmem:[#allocation2 + $0x38] sm:$0xff]
        %v431 = vld [vmem:[#allocation2 + $0x40] sm:$0xff]
        %v432 = vld [vmem:[#allocation2 + $0x48] sm:$0xff]
        %v433 = vld [vmem:[#allocation2 + $0x50] sm:$0xff]
        %v434 = vld [vmem:[#allocation2 + $0x58] sm:$0xff]
        %v435 = vld [vmem:[#allocation2 + $0x60] sm:$0xff]
        %v436 = vld [vmem:[#allocation2 + $0x68] sm:$0xff]
        %v437 = vld [vmem:[#allocation2 + $0x70] sm:$0xff]
        %v438 = vld [vmem:[#allocation2 + $0x78] sm:$0xff]
        %v439 = vld [vmem:[#allocation2 + $0x80] sm:$0xff]
        %v440 = vld [vmem:[#allocation2 + $0x88] sm:$0xff]
        %v441 = vld [vmem:[#allocation2 + $0x90] sm:$0xff]
        %v442 = vld [vmem:[#allocation2 + $0x98] sm:$0xff]
        %v443 = vld [vmem:[#allocation2 + $0xa0] sm:$0xff]
        %v444 = vld [vmem:[#allocation2 + $0xa8] sm:$0xff]
        %v445 = vld [vmem:[#allocation2 + $0xb0] sm:$0xff]
        %v446 = vld [vmem:[#allocation2 + $0xb8] sm:$0xff]
        %v447 = vld [vmem:[#allocation2 + $0xc0] sm:$0xff]
        %v448 = vld [vmem:[#allocation2 + $0xc8] sm:$0xff]
        %v449 = vld [vmem:[#allocation2 + $0xd0] sm:$0xff]
        %v450 = vld [vmem:[#allocation2 + $0xd8] sm:$0xff]
        %v451 = vld [vmem:[#allocation2 + $0xe0] sm:$0xff]
        %v452 = vld [vmem:[#allocation2 + $0xe8] sm:$0xff]
        %v453 = vld [vmem:[#allocation2 + $0xf0] sm:$0xff]
        %v454 = vld [vmem:[#allocation2 + $0xf8] sm:$0xff]
        %v455 = vld [vmem:[#allocation2 + $0x100] sm:$0xff]
        %v456 = vld [vmem:[#allocation2 + $0x108] sm:$0xff]
        %v457 = vld [vmem:[#allocation2 + $0x110] sm:$0xff]
        %v458 = vld [vmem:[#allocation2 + $0x118] sm:$0xff]
        %v459 = vld [vmem:[#allocation2 + $0x120] sm:$0xff]
        %v460 = vld [vmem:[#allocation2 + $0x128] sm:$0xff]
        %v461 = vld [vmem:[#allocation2 + $0x130] sm:$0xff]
        %v462 = vld [vmem:[#allocation2 + $0x138] sm:$0xff]
        %v463 = vld [vmem:[#allocation2 + $0x140] sm:$0xff]
        %v464 = vld [vmem:[#allocation2 + $0x148] sm:$0xff]
        %v465 = vld [vmem:[#allocation2 + $0x150] sm:$0xff]
        %v466 = vld [vmem:[#allocation2 + $0x158] sm:$0xff]
        %v467 = vld [vmem:[#allocation2 + $0x160] sm:$0xff]
        %v468 = vld [vmem:[#allocation2 + $0x168] sm:$0xff]
        %v469 = vld [vmem:[#allocation2 + $0x170] sm:$0xff]
        %v470 = vld [vmem:[#allocation2 + $0x178] sm:$0xff]
        %v471 = vld [vmem:[#allocation2 + $0x180] sm:$0xff]
        %v472 = vld [vmem:[#allocation2 + $0x188] sm:$0xff]
        %v473 = vld [vmem:[#allocation2 + $0x190] sm:$0xff]
        %v474 = vld [vmem:[#allocation2 + $0x198] sm:$0xff]
        %v475 = vld [vmem:[#allocation2 + $0x1a0] sm:$0xff]
        %v476 = vld [vmem:[#allocation2 + $0x1a8] sm:$0xff]
        %v477 = vld [vmem:[#allocation2 + $0x1b0] sm:$0xff]
        %v478 = vld [vmem:[#allocation2 + $0x1b8] sm:$0xff]
        %vm479 = vcmask 523264
        %v481 = vsel %vm479, %v421, 0
        %v484 = vsel %vm479, %v422, 0
        %486 = vmatpush.msra.mxu0 0.0
        %487 = vmatpush.msra.mxu0 0.0
        %488 = vmatpush.msra.mxu0 0.0
        %489 = vmatpush.msra.mxu0 0.0
        %490 = vmatpush.msra.mxu0 0.0
        %491 = vmatpush.msra.mxu0 0.0
        %492 = vmatpush.msra.mxu0 0.0
        %493 = vmatpush.msra.mxu0 0.0
        %494 = vmatpush.msra.mxu0 %v472
        %495 = vmatpush.msra.mxu0 %v465
        %496 = vmatpush.msra.mxu0 %v458
        %497 = vmatpush.msra.mxu0 %v451
        %498 = vmatpush.msra.mxu0 %v444
        %499 = vmatpush.msra.mxu0 %v437
        %500 = vmatpush.msra.mxu0 %v430
        %501 = vmatpush.msra.mxu0 %v423
        %502 = vmatmul.f32.gmra.mxu0 %v481
        %v503 = vpop.f32.mrf.mxu0
        %v504 = vadd.f32 0.0, %v503
        %505 = vmatmul.f32.gmra.mxu0 %v484
        %v506 = vpop.f32.mrf.mxu0
        %v507 = vadd.f32 0.0, %v506
        %508 = vdwg.mxu0
        %509 = vmatpush.msra.mxu0 0.0
        %510 = vmatpush.msra.mxu0 0.0
        %511 = vmatpush.msra.mxu0 0.0
        %512 = vmatpush.msra.mxu0 0.0
        %513 = vmatpush.msra.mxu0 0.0
        %514 = vmatpush.msra.mxu0 0.0
        %515 = vmatpush.msra.mxu0 0.0
        %516 = vmatpush.msra.mxu0 0.0
        %517 = vmatpush.msra.mxu0 %v473
        %518 = vmatpush.msra.mxu0 %v466
        %519 = vmatpush.msra.mxu0 %v459
        %520 = vmatpush.msra.mxu0 %v452
        %521 = vmatpush.msra.mxu0 %v445
        %522 = vmatpush.msra.mxu0 %v438
        %523 = vmatpush.msra.mxu0 %v431
        %524 = vmatpush.msra.mxu0 %v424
        %525 = vmatmul.f32.gmra.mxu0 %v481
        %v526 = vpop.f32.mrf.mxu0
        %v527 = vadd.f32 0.0, %v526
        %528 = vmatmul.f32.gmra.mxu0 %v484
        %v529 = vpop.f32.mrf.mxu0
        %v530 = vadd.f32 0.0, %v529
        %531 = vdwg.mxu0
        %532 = vmatpush.msra.mxu0 0.0
        %533 = vmatpush.msra.mxu0 0.0
        %534 = vmatpush.msra.mxu0 0.0
        %535 = vmatpush.msra.mxu0 0.0
        %536 = vmatpush.msra.mxu0 0.0
        %537 = vmatpush.msra.mxu0 0.0
        %538 = vmatpush.msra.mxu0 0.0
        %539 = vmatpush.msra.mxu0 0.0
        %540 = vmatpush.msra.mxu0 %v474
        %541 = vmatpush.msra.mxu0 %v467
        %542 = vmatpush.msra.mxu0 %v460
        %543 = vmatpush.msra.mxu0 %v453
        %544 = vmatpush.msra.mxu0 %v446
        %545 = vmatpush.msra.mxu0 %v439
        %546 = vmatpush.msra.mxu0 %v432
        %547 = vmatpush.msra.mxu0 %v425
        %548 = vmatmul.f32.gmra.mxu0 %v481
        %v549 = vpop.f32.mrf.mxu0
        %v550 = vadd.f32 0.0, %v549
        %551 = vmatmul.f32.gmra.mxu0 %v484
        %v552 = vpop.f32.mrf.mxu0
        %v553 = vadd.f32 0.0, %v552
        %554 = vdwg.mxu0
        %555 = vmatpush.msra.mxu0 0.0
        %556 = vmatpush.msra.mxu0 0.0
        %557 = vmatpush.msra.mxu0 0.0
        %558 = vmatpush.msra.mxu0 0.0
        %559 = vmatpush.msra.mxu0 0.0
        %560 = vmatpush.msra.mxu0 0.0
        %561 = vmatpush.msra.mxu0 0.0
        %562 = vmatpush.msra.mxu0 0.0
        %563 = vmatpush.msra.mxu0 %v475
        %564 = vmatpush.msra.mxu0 %v468
        %565 = vmatpush.msra.mxu0 %v461
        %566 = vmatpush.msra.mxu0 %v454
        %567 = vmatpush.msra.mxu0 %v447
        %568 = vmatpush.msra.mxu0 %v440
        %569 = vmatpush.msra.mxu0 %v433
        %570 = vmatpush.msra.mxu0 %v426
        %571 = vmatmul.f32.gmra.mxu0 %v481
        %v572 = vpop.f32.mrf.mxu0
        %v573 = vadd.f32 0.0, %v572
        %574 = vmatmul.f32.gmra.mxu0 %v484
        %v575 = vpop.f32.mrf.mxu0
        %v576 = vadd.f32 0.0, %v575
        %577 = vdwg.mxu0
        %578 = vmatpush.msra.mxu0 0.0
        %579 = vmatpush.msra.mxu0 0.0
        %580 = vmatpush.msra.mxu0 0.0
        %581 = vmatpush.msra.mxu0 0.0
        %582 = vmatpush.msra.mxu0 0.0
        %583 = vmatpush.msra.mxu0 0.0
        %584 = vmatpush.msra.mxu0 0.0
        %585 = vmatpush.msra.mxu0 0.0
        %586 = vmatpush.msra.mxu0 %v476
        %587 = vmatpush.msra.mxu0 %v469
        %588 = vmatpush.msra.mxu0 %v462
        %589 = vmatpush.msra.mxu0 %v455
        %590 = vmatpush.msra.mxu0 %v448
        %591 = vmatpush.msra.mxu0 %v441
        %592 = vmatpush.msra.mxu0 %v434
        %593 = vmatpush.msra.mxu0 %v427
        %594 = vmatmul.f32.gmra.mxu0 %v481
        %v595 = vpop.f32.mrf.mxu0
        %v596 = vadd.f32 0.0, %v595
        %597 = vmatmul.f32.gmra.mxu0 %v484
        %v598 = vpop.f32.mrf.mxu0
        %v599 = vadd.f32 0.0, %v598
        %600 = vdwg.mxu0
        %601 = vmatpush.msra.mxu0 0.0
        %602 = vmatpush.msra.mxu0 0.0
        %603 = vmatpush.msra.mxu0 0.0
        %604 = vmatpush.msra.mxu0 0.0
        %605 = vmatpush.msra.mxu0 0.0
        %606 = vmatpush.msra.mxu0 0.0
        %607 = vmatpush.msra.mxu0 0.0
        %608 = vmatpush.msra.mxu0 0.0
        %609 = vmatpush.msra.mxu0 %v477
        %610 = vmatpush.msra.mxu0 %v470
        %611 = vmatpush.msra.mxu0 %v463
        %612 = vmatpush.msra.mxu0 %v456
        %613 = vmatpush.msra.mxu0 %v449
        %614 = vmatpush.msra.mxu0 %v442
        %615 = vmatpush.msra.mxu0 %v435
        %616 = vmatpush.msra.mxu0 %v428
        %617 = vmatmul.f32.gmra.mxu0 %v481
        %v618 = vpop.f32.mrf.mxu0
        %v619 = vadd.f32 0.0, %v618
        %620 = vmatmul.f32.gmra.mxu0 %v484
        %v621 = vpop.f32.mrf.mxu0
        %v622 = vadd.f32 0.0, %v621
        %623 = vdwg.mxu0
        %624 = vmatpush.msra.mxu0 0.0
        %625 = vmatpush.msra.mxu0 0.0
        %626 = vmatpush.msra.mxu0 0.0
        %627 = vmatpush.msra.mxu0 0.0
        %628 = vmatpush.msra.mxu0 0.0
        %629 = vmatpush.msra.mxu0 0.0
        %630 = vmatpush.msra.mxu0 0.0
        %631 = vmatpush.msra.mxu0 0.0
        %632 = vmatpush.msra.mxu0 %v478
        %633 = vmatpush.msra.mxu0 %v471
        %634 = vmatpush.msra.mxu0 %v464
        %635 = vmatpush.msra.mxu0 %v457
        %636 = vmatpush.msra.mxu0 %v450
        %637 = vmatpush.msra.mxu0 %v443
        %638 = vmatpush.msra.mxu0 %v436
        %639 = vmatpush.msra.mxu0 %v429
        %640 = vmatmul.f32.gmra.mxu0 %v481
        %v641 = vpop.f32.mrf.mxu0
        %v642 = vadd.f32 0.0, %v641
        %643 = vmatmul.f32.gmra.mxu0 %v484
        %v644 = vpop.f32.mrf.mxu0
        %v645 = vadd.f32 0.0, %v644
        %646 = vdwg.mxu0
        %v647 = vld [vmem:[%s2] sm:$0xff]
        %v648 = vld [vmem:[%s2 + $0x8] sm:$0xff]
        %vm649 = vcmask 130048
        %v651 = vsel %vm649, %v647, 0
        %v654 = vsel %vm649, %v648, 0
        %656 = vmatpush.msra.mxu0 0.0
        %657 = vmatpush.msra.mxu0 0.0
        %658 = vmatpush.msra.mxu0 0.0
        %659 = vmatpush.msra.mxu0 0.0
        %660 = vmatpush.msra.mxu0 0.0
        %661 = vmatpush.msra.mxu0 0.0
        %662 = vmatpush.msra.mxu0 0.0
        %663 = vmatpush.msra.mxu0 0.0
        %664 = vmatpush.msra.mxu0 0.0
        %665 = vmatpush.msra.mxu0 0.0
        %666 = vmatpush.msra.mxu0 0.0
        %667 = vmatpush.msra.mxu0 0.0
        %668 = vmatpush.msra.mxu0 0.0
        %669 = vmatpush.msra.mxu0 0.0
        %670 = vmatpush.msra.mxu0 %v530
        %671 = vmatpush.msra.mxu0 %v527
        %672 = vmatmul.f32.gmra.mxu0 %v651
        %v673 = vpop.f32.mrf.mxu0
        %v674 = vadd.f32 0.0, %v673
        %675 = vmatmul.f32.gmra.mxu0 %v654
        %v676 = vpop.f32.mrf.mxu0
        %v677 = vadd.f32 0.0, %v676
        %678 = vdwg.mxu0
        %v679 = vadd.f32 %v504, %v674
        %v680 = vadd.f32 %v507, %v677
        %s681 = scalar_lea.vmem %s2, 16
        %v682 = vld [vmem:[%s681] sm:$0xff]
        %v683 = vld [vmem:[%s681 + $0x8] sm:$0xff]
        %v685 = vsel %vm649, %v682, 0
        %v688 = vsel %vm649, %v683, 0
        %690 = vmatpush.msra.mxu0 0.0
        %691 = vmatpush.msra.mxu0 0.0
        %692 = vmatpush.msra.mxu0 0.0
        %693 = vmatpush.msra.mxu0 0.0
        %694 = vmatpush.msra.mxu0 0.0
        %695 = vmatpush.msra.mxu0 0.0
        %696 = vmatpush.msra.mxu0 0.0
        %697 = vmatpush.msra.mxu0 0.0
        %698 = vmatpush.msra.mxu0 0.0
        %699 = vmatpush.msra.mxu0 0.0
        %700 = vmatpush.msra.mxu0 0.0
        %701 = vmatpush.msra.mxu0 0.0
        %702 = vmatpush.msra.mxu0 0.0
        %703 = vmatpush.msra.mxu0 0.0
        %704 = vmatpush.msra.mxu0 %v553
        %705 = vmatpush.msra.mxu0 %v550
        %706 = vmatmul.f32.gmra.mxu0 %v685
        %v707 = vpop.f32.mrf.mxu0
        %v708 = vadd.f32 0.0, %v707
        %709 = vmatmul.f32.gmra.mxu0 %v688
        %v710 = vpop.f32.mrf.mxu0
        %v711 = vadd.f32 0.0, %v710
        %712 = vdwg.mxu0
        %v713 = vadd.f32 %v679, %v708
        %v714 = vadd.f32 %v680, %v711
        %s715 = scalar_lea.vmem %s2, 32
        %v716 = vld [vmem:[%s715] sm:$0xff]
        %v717 = vld [vmem:[%s715 + $0x8] sm:$0xff]
        %v719 = vsel %vm649, %v716, 0
        %v722 = vsel %vm649, %v717, 0
        %724 = vmatpush.msra.mxu0 0.0
        %725 = vmatpush.msra.mxu0 0.0
        %726 = vmatpush.msra.mxu0 0.0
        %727 = vmatpush.msra.mxu0 0.0
        %728 = vmatpush.msra.mxu0 0.0
        %729 = vmatpush.msra.mxu0 0.0
        %730 = vmatpush.msra.mxu0 0.0
        %731 = vmatpush.msra.mxu0 0.0
        %732 = vmatpush.msra.mxu0 0.0
        %733 = vmatpush.msra.mxu0 0.0
        %734 = vmatpush.msra.mxu0 0.0
        %735 = vmatpush.msra.mxu0 0.0
        %736 = vmatpush.msra.mxu0 0.0
        %737 = vmatpush.msra.mxu0 0.0
        %738 = vmatpush.msra.mxu0 %v576
        %739 = vmatpush.msra.mxu0 %v573
        %740 = vmatmul.f32.gmra.mxu0 %v719
        %v741 = vpop.f32.mrf.mxu0
        %v742 = vadd.f32 0.0, %v741
        %743 = vmatmul.f32.gmra.mxu0 %v722
        %v744 = vpop.f32.mrf.mxu0
        %v745 = vadd.f32 0.0, %v744
        %746 = vdwg.mxu0
        %v747 = vadd.f32 %v713, %v742
        %v748 = vadd.f32 %v714, %v745
        %s749 = scalar_lea.vmem %s2, 48
        %v750 = vld [vmem:[%s749] sm:$0xff]
        %v751 = vld [vmem:[%s749 + $0x8] sm:$0xff]
        %v753 = vsel %vm649, %v750, 0
        %v756 = vsel %vm649, %v751, 0
        %758 = vmatpush.msra.mxu0 0.0
        %759 = vmatpush.msra.mxu0 0.0
        %760 = vmatpush.msra.mxu0 0.0
        %761 = vmatpush.msra.mxu0 0.0
        %762 = vmatpush.msra.mxu0 0.0
        %763 = vmatpush.msra.mxu0 0.0
        %764 = vmatpush.msra.mxu0 0.0
        %765 = vmatpush.msra.mxu0 0.0
        %766 = vmatpush.msra.mxu0 0.0
        %767 = vmatpush.msra.mxu0 0.0
        %768 = vmatpush.msra.mxu0 0.0
        %769 = vmatpush.msra.mxu0 0.0
        %770 = vmatpush.msra.mxu0 0.0
        %771 = vmatpush.msra.mxu0 0.0
        %772 = vmatpush.msra.mxu0 %v599
        %773 = vmatpush.msra.mxu0 %v596
        %774 = vmatmul.f32.gmra.mxu0 %v753
        %v775 = vpop.f32.mrf.mxu0
        %v776 = vadd.f32 0.0, %v775
        %777 = vmatmul.f32.gmra.mxu0 %v756
        %v778 = vpop.f32.mrf.mxu0
        %v779 = vadd.f32 0.0, %v778
        %780 = vdwg.mxu0
        %v781 = vadd.f32 %v747, %v776
        %v782 = vadd.f32 %v748, %v779
        %s783 = scalar_lea.vmem %s2, 64
        %v784 = vld [vmem:[%s783] sm:$0xff]
        %v785 = vld [vmem:[%s783 + $0x8] sm:$0xff]
        %v787 = vsel %vm649, %v784, 0
        %v790 = vsel %vm649, %v785, 0
        %792 = vmatpush.msra.mxu0 0.0
        %793 = vmatpush.msra.mxu0 0.0
        %794 = vmatpush.msra.mxu0 0.0
        %795 = vmatpush.msra.mxu0 0.0
        %796 = vmatpush.msra.mxu0 0.0
        %797 = vmatpush.msra.mxu0 0.0
        %798 = vmatpush.msra.mxu0 0.0
        %799 = vmatpush.msra.mxu0 0.0
        %800 = vmatpush.msra.mxu0 0.0
        %801 = vmatpush.msra.mxu0 0.0
        %802 = vmatpush.msra.mxu0 0.0
        %803 = vmatpush.msra.mxu0 0.0
        %804 = vmatpush.msra.mxu0 0.0
        %805 = vmatpush.msra.mxu0 0.0
        %806 = vmatpush.msra.mxu0 %v622
        %807 = vmatpush.msra.mxu0 %v619
        %808 = vmatmul.f32.gmra.mxu0 %v787
        %v809 = vpop.f32.mrf.mxu0
        %v810 = vadd.f32 0.0, %v809
        %811 = vmatmul.f32.gmra.mxu0 %v790
        %v812 = vpop.f32.mrf.mxu0
        %v813 = vadd.f32 0.0, %v812
        %814 = vdwg.mxu0
        %v815 = vadd.f32 %v781, %v810
        %v816 = vadd.f32 %v782, %v813
        %s817 = scalar_lea.vmem %s2, 80
        %v818 = vld [vmem:[%s817] sm:$0xff]
        %v819 = vld [vmem:[%s817 + $0x8] sm:$0xff]
        %v821 = vsel %vm649, %v818, 0
        %v824 = vsel %vm649, %v819, 0
        %826 = vmatpush.msra.mxu0 0.0
        %827 = vmatpush.msra.mxu0 0.0
        %828 = vmatpush.msra.mxu0 0.0
        %829 = vmatpush.msra.mxu0 0.0
        %830 = vmatpush.msra.mxu0 0.0
        %831 = vmatpush.msra.mxu0 0.0
        %832 = vmatpush.msra.mxu0 0.0
        %833 = vmatpush.msra.mxu0 0.0
        %834 = vmatpush.msra.mxu0 0.0
        %835 = vmatpush.msra.mxu0 0.0
        %836 = vmatpush.msra.mxu0 0.0
        %837 = vmatpush.msra.mxu0 0.0
        %838 = vmatpush.msra.mxu0 0.0
        %839 = vmatpush.msra.mxu0 0.0
        %840 = vmatpush.msra.mxu0 %v645
        %841 = vmatpush.msra.mxu0 %v642
        %842 = vmatmul.f32.gmra.mxu0 %v821
        %v843 = vpop.f32.mrf.mxu0
        %v844 = vadd.f32 0.0, %v843
        %845 = vmatmul.f32.gmra.mxu0 %v824
        %v846 = vpop.f32.mrf.mxu0
        %v847 = vadd.f32 0.0, %v846
        %848 = vdwg.mxu0
        %v849 = vadd.f32 %v815, %v844
        %v850 = vadd.f32 %v816, %v847
        %v851 = vld [vmem:[%s3] sm:$0x1]
        %v853 = vperm.slane %v851, 0
        %v855 = vadd.f32 %v849, %v853
        %v856 = vadd.f32 %v850, %v853
        %v857 = vmax.f32 %v855, 0.0
        %v858 = vmax.f32 %v856, 0.0
        %v859 = vld [vmem:[%s4] sm:$0x1]
        %v861 = vperm.slane %v859, 0
        %v863 = vmul.f32 %v857, %v861
        %v864 = vmul.f32 %v858, %v861
        %v865 = vld [vmem:[%s5] sm:$0x1]
        %v867 = vperm.slane %v865, 0
        %v869 = vadd.f32 %v863, %v867
        %v870 = vadd.f32 %v864, %v867
        %v871 = vld [vmem:[#allocation4] sm:$0xff]
        %v872 = vld [vmem:[#allocation4 + $0x8] sm:$0xff]
        %v873 = vld [vmem:[#allocation4 + $0x10] sm:$0xff]
        %v874 = vld [vmem:[#allocation4 + $0x18] sm:$0xff]
        %v875 = vld [vmem:[#allocation4 + $0x20] sm:$0xff]
        %v876 = vld [vmem:[#allocation4 + $0x28] sm:$0xff]
        %v877 = vld [vmem:[#allocation4 + $0x30] sm:$0xff]
        %v878 = vld [vmem:[#allocation4 + $0x38] sm:$0xff]
        %v879 = vld [vmem:[#allocation4 + $0x40] sm:$0xff]
        %v880 = vld [vmem:[#allocation4 + $0x48] sm:$0xff]
        %v881 = vld [vmem:[#allocation4 + $0x50] sm:$0xff]
        %v882 = vld [vmem:[#allocation4 + $0x58] sm:$0xff]
        %v883 = vld [vmem:[#allocation4 + $0x60] sm:$0xff]
        %v884 = vld [vmem:[#allocation4 + $0x68] sm:$0xff]
        %v885 = vld [vmem:[#allocation4 + $0x70] sm:$0xff]
        %v886 = vld [vmem:[#allocation4 + $0x78] sm:$0xff]
        %v887 = vld [vmem:[#allocation4 + $0x80] sm:$0xff]
        %v888 = vld [vmem:[#allocation4 + $0x88] sm:$0xff]
        %v889 = vld [vmem:[#allocation4 + $0x90] sm:$0xff]
        %v890 = vld [vmem:[#allocation4 + $0x98] sm:$0xff]
        %v891 = vld [vmem:[#allocation4 + $0xa0] sm:$0xff]
        %v892 = vld [vmem:[#allocation4 + $0xa8] sm:$0xff]
        %v893 = vld [vmem:[#allocation4 + $0xb0] sm:$0xff]
        %v894 = vld [vmem:[#allocation4 + $0xb8] sm:$0xff]
        %v895 = vld [vmem:[#allocation4 + $0xc0] sm:$0xff]
        %v896 = vld [vmem:[#allocation4 + $0xc8] sm:$0xff]
        %v897 = vld [vmem:[#allocation4 + $0xd0] sm:$0xff]
        %v898 = vld [vmem:[#allocation4 + $0xd8] sm:$0xff]
        %v899 = vld [vmem:[#allocation4 + $0xe0] sm:$0xff]
        %v900 = vld [vmem:[#allocation4 + $0xe8] sm:$0xff]
        %v901 = vld [vmem:[#allocation4 + $0xf0] sm:$0xff]
        %v902 = vld [vmem:[#allocation4 + $0xf8] sm:$0xff]
        %v903 = vld [vmem:[#allocation4 + $0x100] sm:$0xff]
        %v904 = vld [vmem:[#allocation4 + $0x108] sm:$0xff]
        %v905 = vld [vmem:[#allocation4 + $0x110] sm:$0xff]
        %v906 = vld [vmem:[#allocation4 + $0x118] sm:$0xff]
        %v907 = vld [vmem:[#allocation4 + $0x120] sm:$0xff]
        %v908 = vld [vmem:[#allocation4 + $0x128] sm:$0xff]
        %v909 = vld [vmem:[#allocation4 + $0x130] sm:$0xff]
        %v910 = vld [vmem:[#allocation4 + $0x138] sm:$0xff]
        %v911 = vld [vmem:[#allocation4 + $0x140] sm:$0xff]
        %v912 = vld [vmem:[#allocation4 + $0x148] sm:$0xff]
        %v913 = vld [vmem:[#allocation4 + $0x150] sm:$0xff]
        %v914 = vld [vmem:[#allocation4 + $0x158] sm:$0xff]
        %v915 = vld [vmem:[#allocation4 + $0x160] sm:$0xff]
        %v916 = vld [vmem:[#allocation4 + $0x168] sm:$0xff]
        %v917 = vld [vmem:[#allocation4 + $0x170] sm:$0xff]
        %v918 = vld [vmem:[#allocation4 + $0x178] sm:$0xff]
        %v919 = vld [vmem:[#allocation4 + $0x180] sm:$0xff]
        %v920 = vld [vmem:[#allocation4 + $0x188] sm:$0xff]
        %v921 = vld [vmem:[#allocation4 + $0x190] sm:$0xff]
        %v922 = vld [vmem:[#allocation4 + $0x198] sm:$0xff]
        %v923 = vld [vmem:[#allocation4 + $0x1a0] sm:$0xff]
        %v924 = vld [vmem:[#allocation4 + $0x1a8] sm:$0xff]
        %v925 = vld [vmem:[#allocation4 + $0x1b0] sm:$0xff]
        %v926 = vld [vmem:[#allocation4 + $0x1b8] sm:$0xff]
        %v927 = vld [vmem:[#allocation4 + $0x1c0] sm:$0xff]
        %v928 = vld [vmem:[#allocation4 + $0x1c8] sm:$0xff]
        %v929 = vld [vmem:[#allocation4 + $0x1d0] sm:$0xff]
        %v930 = vld [vmem:[#allocation4 + $0x1d8] sm:$0xff]
        %v931 = vld [vmem:[#allocation4 + $0x1e0] sm:$0xff]
        %v932 = vld [vmem:[#allocation4 + $0x1e8] sm:$0xff]
        %v933 = vld [vmem:[#allocation4 + $0x1f0] sm:$0xff]
        %v934 = vld [vmem:[#allocation4 + $0x1f8] sm:$0xff]
        %v935 = vld [vmem:[#allocation4 + $0x200] sm:$0xff]
        %v936 = vld [vmem:[#allocation4 + $0x208] sm:$0xff]
        %v937 = vld [vmem:[#allocation4 + $0x210] sm:$0xff]
        %v938 = vld [vmem:[#allocation4 + $0x218] sm:$0xff]
        %v939 = vld [vmem:[#allocation4 + $0x220] sm:$0xff]
        %v940 = vld [vmem:[#allocation4 + $0x228] sm:$0xff]
        %v941 = vld [vmem:[#allocation4 + $0x230] sm:$0xff]
        %v942 = vld [vmem:[#allocation4 + $0x238] sm:$0xff]
        %v943 = vld [vmem:[#allocation4 + $0x240] sm:$0xff]
        %v944 = vld [vmem:[#allocation4 + $0x248] sm:$0xff]
        %v945 = vld [vmem:[#allocation4 + $0x250] sm:$0xff]
        %v946 = vld [vmem:[#allocation4 + $0x258] sm:$0xff]
        %v947 = vld [vmem:[#allocation4 + $0x260] sm:$0xff]
        %v948 = vld [vmem:[#allocation4 + $0x268] sm:$0xff]
        %v949 = vld [vmem:[#allocation4 + $0x270] sm:$0xff]
        %v950 = vld [vmem:[#allocation4 + $0x278] sm:$0xff]
        %v951 = vld [vmem:[#allocation4 + $0x280] sm:$0xff]
        %v952 = vld [vmem:[#allocation4 + $0x288] sm:$0xff]
        %v953 = vld [vmem:[#allocation4 + $0x290] sm:$0xff]
        %v954 = vld [vmem:[#allocation4 + $0x298] sm:$0xff]
        %v955 = vld [vmem:[#allocation4 + $0x2a0] sm:$0xff]
        %v956 = vld [vmem:[#allocation4 + $0x2a8] sm:$0xff]
        %v957 = vld [vmem:[#allocation4 + $0x2b0] sm:$0xff]
        %v958 = vld [vmem:[#allocation4 + $0x2b8] sm:$0xff]
        %v959 = vld [vmem:[#allocation4 + $0x2c0] sm:$0xff]
        %v960 = vld [vmem:[#allocation4 + $0x2c8] sm:$0xff]
        %v961 = vld [vmem:[#allocation4 + $0x2d0] sm:$0xff]
        %v962 = vld [vmem:[#allocation4 + $0x2d8] sm:$0xff]
        %v963 = vld [vmem:[#allocation4 + $0x2e0] sm:$0xff]
        %v964 = vld [vmem:[#allocation4 + $0x2e8] sm:$0xff]
        %v965 = vld [vmem:[#allocation4 + $0x2f0] sm:$0xff]
        %v966 = vld [vmem:[#allocation4 + $0x2f8] sm:$0xff]
        %967 = vmatpush.msra.mxu0 %v961
        %968 = vmatpush.msra.mxu0 %v955
        %969 = vmatpush.msra.mxu0 %v949
        %970 = vmatpush.msra.mxu0 %v943
        %971 = vmatpush.msra.mxu0 %v937
        %972 = vmatpush.msra.mxu0 %v931
        %973 = vmatpush.msra.mxu0 %v925
        %974 = vmatpush.msra.mxu0 %v919
        %975 = vmatpush.msra.mxu0 %v913
        %976 = vmatpush.msra.mxu0 %v907
        %977 = vmatpush.msra.mxu0 %v901
        %978 = vmatpush.msra.mxu0 %v895
        %979 = vmatpush.msra.mxu0 %v889
        %980 = vmatpush.msra.mxu0 %v883
        %981 = vmatpush.msra.mxu0 %v877
        %982 = vmatpush.msra.mxu0 %v871
        %983 = vmatmul.f32.gmra.mxu0 %v869
        %v984 = vpop.f32.mrf.mxu0
        %v985 = vadd.f32 0.0, %v984
        %986 = vmatmul.f32.gmra.mxu0 %v870
        %v987 = vpop.f32.mrf.mxu0
        %v988 = vadd.f32 0.0, %v987
        %989 = vdwg.mxu0
        %990 = vmatpush.msra.mxu0 %v962
        %991 = vmatpush.msra.mxu0 %v956
        %992 = vmatpush.msra.mxu0 %v950
        %993 = vmatpush.msra.mxu0 %v944
        %994 = vmatpush.msra.mxu0 %v938
        %995 = vmatpush.msra.mxu0 %v932
        %996 = vmatpush.msra.mxu0 %v926
        %997 = vmatpush.msra.mxu0 %v920
        %998 = vmatpush.msra.mxu0 %v914
        %999 = vmatpush.msra.mxu0 %v908
        %1000 = vmatpush.msra.mxu0 %v902
        %1001 = vmatpush.msra.mxu0 %v896
        %1002 = vmatpush.msra.mxu0 %v890
        %1003 = vmatpush.msra.mxu0 %v884
        %1004 = vmatpush.msra.mxu0 %v878
        %1005 = vmatpush.msra.mxu0 %v872
        %1006 = vmatmul.f32.gmra.mxu0 %v869
        %v1007 = vpop.f32.mrf.mxu0
        %v1008 = vadd.f32 0.0, %v1007
        %1009 = vmatmul.f32.gmra.mxu0 %v870
        %v1010 = vpop.f32.mrf.mxu0
        %v1011 = vadd.f32 0.0, %v1010
        %1012 = vdwg.mxu0
        %1013 = vmatpush.msra.mxu0 %v963
        %1014 = vmatpush.msra.mxu0 %v957
        %1015 = vmatpush.msra.mxu0 %v951
        %1016 = vmatpush.msra.mxu0 %v945
        %1017 = vmatpush.msra.mxu0 %v939
        %1018 = vmatpush.msra.mxu0 %v933
        %1019 = vmatpush.msra.mxu0 %v927
        %1020 = vmatpush.msra.mxu0 %v921
        %1021 = vmatpush.msra.mxu0 %v915
        %1022 = vmatpush.msra.mxu0 %v909
        %1023 = vmatpush.msra.mxu0 %v903
        %1024 = vmatpush.msra.mxu0 %v897
        %1025 = vmatpush.msra.mxu0 %v891
        %1026 = vmatpush.msra.mxu0 %v885
        %1027 = vmatpush.msra.mxu0 %v879
        %1028 = vmatpush.msra.mxu0 %v873
        %1029 = vmatmul.f32.gmra.mxu0 %v869
        %v1030 = vpop.f32.mrf.mxu0
        %v1031 = vadd.f32 0.0, %v1030
        %1032 = vmatmul.f32.gmra.mxu0 %v870
        %v1033 = vpop.f32.mrf.mxu0
        %v1034 = vadd.f32 0.0, %v1033
        %1035 = vdwg.mxu0
        %1036 = vmatpush.msra.mxu0 %v964
        %1037 = vmatpush.msra.mxu0 %v958
        %1038 = vmatpush.msra.mxu0 %v952
        %1039 = vmatpush.msra.mxu0 %v946
        %1040 = vmatpush.msra.mxu0 %v940
        %1041 = vmatpush.msra.mxu0 %v934
        %1042 = vmatpush.msra.mxu0 %v928
        %1043 = vmatpush.msra.mxu0 %v922
        %1044 = vmatpush.msra.mxu0 %v916
        %1045 = vmatpush.msra.mxu0 %v910
        %1046 = vmatpush.msra.mxu0 %v904
        %1047 = vmatpush.msra.mxu0 %v898
        %1048 = vmatpush.msra.mxu0 %v892
        %1049 = vmatpush.msra.mxu0 %v886
        %1050 = vmatpush.msra.mxu0 %v880
        %1051 = vmatpush.msra.mxu0 %v874
        %1052 = vmatmul.f32.gmra.mxu0 %v869
        %v1053 = vpop.f32.mrf.mxu0
        %v1054 = vadd.f32 0.0, %v1053
        %1055 = vmatmul.f32.gmra.mxu0 %v870
        %v1056 = vpop.f32.mrf.mxu0
        %v1057 = vadd.f32 0.0, %v1056
        %1058 = vdwg.mxu0
        %1059 = vmatpush.msra.mxu0 %v965
        %1060 = vmatpush.msra.mxu0 %v959
        %1061 = vmatpush.msra.mxu0 %v953
        %1062 = vmatpush.msra.mxu0 %v947
        %1063 = vmatpush.msra.mxu0 %v941
        %1064 = vmatpush.msra.mxu0 %v935
        %1065 = vmatpush.msra.mxu0 %v929
        %1066 = vmatpush.msra.mxu0 %v923
        %1067 = vmatpush.msra.mxu0 %v917
        %1068 = vmatpush.msra.mxu0 %v911
        %1069 = vmatpush.msra.mxu0 %v905
        %1070 = vmatpush.msra.mxu0 %v899
        %1071 = vmatpush.msra.mxu0 %v893
        %1072 = vmatpush.msra.mxu0 %v887
        %1073 = vmatpush.msra.mxu0 %v881
        %1074 = vmatpush.msra.mxu0 %v875
        %1075 = vmatmul.f32.gmra.mxu0 %v869
        %v1076 = vpop.f32.mrf.mxu0
        %v1077 = vadd.f32 0.0, %v1076
        %1078 = vmatmul.f32.gmra.mxu0 %v870
        %v1079 = vpop.f32.mrf.mxu0
        %v1080 = vadd.f32 0.0, %v1079
        %1081 = vdwg.mxu0
        %1082 = vmatpush.msra.mxu0 %v966
        %1083 = vmatpush.msra.mxu0 %v960
        %1084 = vmatpush.msra.mxu0 %v954
        %1085 = vmatpush.msra.mxu0 %v948
        %1086 = vmatpush.msra.mxu0 %v942
        %1087 = vmatpush.msra.mxu0 %v936
        %1088 = vmatpush.msra.mxu0 %v930
        %1089 = vmatpush.msra.mxu0 %v924
        %1090 = vmatpush.msra.mxu0 %v918
        %1091 = vmatpush.msra.mxu0 %v912
        %1092 = vmatpush.msra.mxu0 %v906
        %1093 = vmatpush.msra.mxu0 %v900
        %1094 = vmatpush.msra.mxu0 %v894
        %1095 = vmatpush.msra.mxu0 %v888
        %1096 = vmatpush.msra.mxu0 %v882
        %1097 = vmatpush.msra.mxu0 %v876
        %1098 = vmatmul.f32.gmra.mxu0 %v869
        %v1099 = vpop.f32.mrf.mxu0
        %v1100 = vadd.f32 0.0, %v1099
        %1101 = vmatmul.f32.gmra.mxu0 %v870
        %v1102 = vpop.f32.mrf.mxu0
        %v1103 = vadd.f32 0.0, %v1102
        %1104 = vdwg.mxu0
        %v1105 = vld [vmem:[%s7] sm:$0xff]
        %v1106 = vld [vmem:[%s7 + $0x8] sm:$0xff]
        %v1107 = vld [vmem:[%s7 + $0x10] sm:$0xff]
        %v1108 = vld [vmem:[%s7 + $0x18] sm:$0xff]
        %s1109 = scalar_lea.vmem %s7, 32
        %v1110 = vld [vmem:[%s1109] sm:$0xff]
        %v1111 = vld [vmem:[%s1109 + $0x8] sm:$0xff]
        %v1112 = vld [vmem:[%s1109 + $0x10] sm:$0xff]
        %v1113 = vld [vmem:[%s1109 + $0x18] sm:$0xff]
        %v1115 = vsel %vm649, %v1110, 0
        %v1118 = vsel %vm649, %v1111, 0
        %v1121 = vsel %vm649, %v1112, 0
        %v1124 = vsel %vm649, %v1113, 0
        %1126 = vmatpush.msra.mxu0 0.0
        %1127 = vmatpush.msra.mxu0 0.0
        %1128 = vmatpush.msra.mxu0 0.0
        %1129 = vmatpush.msra.mxu0 0.0
        %1130 = vmatpush.msra.mxu0 0.0
        %1131 = vmatpush.msra.mxu0 0.0
        %1132 = vmatpush.msra.mxu0 0.0
        %1133 = vmatpush.msra.mxu0 0.0
        %1134 = vmatpush.msra.mxu0 0.0
        %1135 = vmatpush.msra.mxu0 0.0
        %1136 = vmatpush.msra.mxu0 0.0
        %1137 = vmatpush.msra.mxu0 0.0
        %1138 = vmatpush.msra.mxu0 0.0
        %1139 = vmatpush.msra.mxu0 0.0
        %1140 = vmatpush.msra.mxu0 %v1034
        %1141 = vmatpush.msra.mxu0 %v1031
        %1142 = vmatmul.f32.gmra.mxu0 %v1115
        %v1143 = vpop.f32.mrf.mxu0
        %v1144 = vadd.f32 0.0, %v1143
        %1145 = vmatmul.f32.gmra.mxu0 %v1118
        %v1146 = vpop.f32.mrf.mxu0
        %v1147 = vadd.f32 0.0, %v1146
        %1148 = vmatmul.f32.gmra.mxu0 %v1121
        %v1149 = vpop.f32.mrf.mxu0
        %v1150 = vadd.f32 0.0, %v1149
        %1151 = vmatmul.f32.gmra.mxu0 %v1124
        %v1152 = vpop.f32.mrf.mxu0
        %v1153 = vadd.f32 0.0, %v1152
        %1154 = vdwg.mxu0
        %1155 = vmatpush.msra.mxu0 0.0
        %1156 = vmatpush.msra.mxu0 0.0
        %1157 = vmatpush.msra.mxu0 0.0
        %1158 = vmatpush.msra.mxu0 0.0
        %1159 = vmatpush.msra.mxu0 0.0
        %1160 = vmatpush.msra.mxu0 0.0
        %1161 = vmatpush.msra.mxu0 0.0
        %1162 = vmatpush.msra.mxu0 0.0
        %1163 = vmatpush.msra.mxu0 0.0
        %1164 = vmatpush.msra.mxu0 0.0
        %1165 = vmatpush.msra.mxu0 0.0
        %1166 = vmatpush.msra.mxu0 0.0
        %1167 = vmatpush.msra.mxu0 0.0
        %1168 = vmatpush.msra.mxu0 0.0
        %1169 = vmatpush.msra.mxu0 %v1057
        %1170 = vmatpush.msra.mxu0 %v1054
        %1171 = vmatmul.f32.gmra.mxu0 %v1115
        %v1172 = vpop.f32.mrf.mxu0
        %v1173 = vadd.f32 0.0, %v1172
        %1174 = vmatmul.f32.gmra.mxu0 %v1118
        %v1175 = vpop.f32.mrf.mxu0
        %v1176 = vadd.f32 0.0, %v1175
        %1177 = vmatmul.f32.gmra.mxu0 %v1121
        %v1178 = vpop.f32.mrf.mxu0
        %v1179 = vadd.f32 0.0, %v1178
        %1180 = vmatmul.f32.gmra.mxu0 %v1124
        %v1181 = vpop.f32.mrf.mxu0
        %v1182 = vadd.f32 0.0, %v1181
        %1183 = vdwg.mxu0
        %v1185 = vsel %vm649, %v1105, 0
        %v1188 = vsel %vm649, %v1106, 0
        %v1191 = vsel %vm649, %v1107, 0
        %v1194 = vsel %vm649, %v1108, 0
        %1196 = vmatpush.msra.mxu0 0.0
        %1197 = vmatpush.msra.mxu0 0.0
        %1198 = vmatpush.msra.mxu0 0.0
        %1199 = vmatpush.msra.mxu0 0.0
        %1200 = vmatpush.msra.mxu0 0.0
        %1201 = vmatpush.msra.mxu0 0.0
        %1202 = vmatpush.msra.mxu0 0.0
        %1203 = vmatpush.msra.mxu0 0.0
        %1204 = vmatpush.msra.mxu0 0.0
        %1205 = vmatpush.msra.mxu0 0.0
        %1206 = vmatpush.msra.mxu0 0.0
        %1207 = vmatpush.msra.mxu0 0.0
        %1208 = vmatpush.msra.mxu0 0.0
        %1209 = vmatpush.msra.mxu0 0.0
        %1210 = vmatpush.msra.mxu0 %v988
        %1211 = vmatpush.msra.mxu0 %v985
        %1212 = vmatmul.f32.gmra.mxu0 %v1185
        %v1213 = vpop.f32.mrf.mxu0
        %v1214 = vadd.f32 %v1144, %v1213
        %1215 = vmatmul.f32.gmra.mxu0 %v1188
        %v1216 = vpop.f32.mrf.mxu0
        %v1217 = vadd.f32 %v1147, %v1216
        %1218 = vmatmul.f32.gmra.mxu0 %v1191
        %v1219 = vpop.f32.mrf.mxu0
        %v1220 = vadd.f32 %v1150, %v1219
        %1221 = vmatmul.f32.gmra.mxu0 %v1194
        %v1222 = vpop.f32.mrf.mxu0
        %v1223 = vadd.f32 %v1153, %v1222
        %1224 = vdwg.mxu0
        %1225 = vmatpush.msra.mxu0 0.0
        %1226 = vmatpush.msra.mxu0 0.0
        %1227 = vmatpush.msra.mxu0 0.0
        %1228 = vmatpush.msra.mxu0 0.0
        %1229 = vmatpush.msra.mxu0 0.0
        %1230 = vmatpush.msra.mxu0 0.0
        %1231 = vmatpush.msra.mxu0 0.0
        %1232 = vmatpush.msra.mxu0 0.0
        %1233 = vmatpush.msra.mxu0 0.0
        %1234 = vmatpush.msra.mxu0 0.0
        %1235 = vmatpush.msra.mxu0 0.0
        %1236 = vmatpush.msra.mxu0 0.0
        %1237 = vmatpush.msra.mxu0 0.0
        %1238 = vmatpush.msra.mxu0 0.0
        %1239 = vmatpush.msra.mxu0 %v1011
        %1240 = vmatpush.msra.mxu0 %v1008
        %1241 = vmatmul.f32.gmra.mxu0 %v1185
        %v1242 = vpop.f32.mrf.mxu0
        %v1243 = vadd.f32 %v1173, %v1242
        %1244 = vmatmul.f32.gmra.mxu0 %v1188
        %v1245 = vpop.f32.mrf.mxu0
        %v1246 = vadd.f32 %v1176, %v1245
        %1247 = vmatmul.f32.gmra.mxu0 %v1191
        %v1248 = vpop.f32.mrf.mxu0
        %v1249 = vadd.f32 %v1179, %v1248
        %1250 = vmatmul.f32.gmra.mxu0 %v1194
        %v1251 = vpop.f32.mrf.mxu0
        %v1252 = vadd.f32 %v1182, %v1251
        %1253 = vdwg.mxu0
        %s1254 = scalar_lea.vmem %s7, 64
        %v1255 = vld [vmem:[%s1254] sm:$0xff]
        %v1256 = vld [vmem:[%s1254 + $0x8] sm:$0xff]
        %v1257 = vld [vmem:[%s1254 + $0x10] sm:$0xff]
        %v1258 = vld [vmem:[%s1254 + $0x18] sm:$0xff]
        %v1260 = vsel %vm649, %v1255, 0
        %v1263 = vsel %vm649, %v1256, 0
        %v1266 = vsel %vm649, %v1257, 0
        %v1269 = vsel %vm649, %v1258, 0
        %1271 = vmatpush.msra.mxu0 0.0
        %1272 = vmatpush.msra.mxu0 0.0
        %1273 = vmatpush.msra.mxu0 0.0
        %1274 = vmatpush.msra.mxu0 0.0
        %1275 = vmatpush.msra.mxu0 0.0
        %1276 = vmatpush.msra.mxu0 0.0
        %1277 = vmatpush.msra.mxu0 0.0
        %1278 = vmatpush.msra.mxu0 0.0
        %1279 = vmatpush.msra.mxu0 0.0
        %1280 = vmatpush.msra.mxu0 0.0
        %1281 = vmatpush.msra.mxu0 0.0
        %1282 = vmatpush.msra.mxu0 0.0
        %1283 = vmatpush.msra.mxu0 0.0
        %1284 = vmatpush.msra.mxu0 0.0
        %1285 = vmatpush.msra.mxu0 %v1080
        %1286 = vmatpush.msra.mxu0 %v1077
        %1287 = vmatmul.f32.gmra.mxu0 %v1260
        %v1288 = vpop.f32.mrf.mxu0
        %v1289 = vadd.f32 0.0, %v1288
        %1290 = vmatmul.f32.gmra.mxu0 %v1263
        %v1291 = vpop.f32.mrf.mxu0
        %v1292 = vadd.f32 0.0, %v1291
        %1293 = vmatmul.f32.gmra.mxu0 %v1266
        %v1294 = vpop.f32.mrf.mxu0
        %v1295 = vadd.f32 0.0, %v1294
        %1296 = vmatmul.f32.gmra.mxu0 %v1269
        %v1297 = vpop.f32.mrf.mxu0
        %v1298 = vadd.f32 0.0, %v1297
        %1299 = vdwg.mxu0
        %1300 = vmatpush.msra.mxu0 0.0
        %1301 = vmatpush.msra.mxu0 0.0
        %1302 = vmatpush.msra.mxu0 0.0
        %1303 = vmatpush.msra.mxu0 0.0
        %1304 = vmatpush.msra.mxu0 0.0
        %1305 = vmatpush.msra.mxu0 0.0
        %1306 = vmatpush.msra.mxu0 0.0
        %1307 = vmatpush.msra.mxu0 0.0
        %1308 = vmatpush.msra.mxu0 0.0
        %1309 = vmatpush.msra.mxu0 0.0
        %1310 = vmatpush.msra.mxu0 0.0
        %1311 = vmatpush.msra.mxu0 0.0
        %1312 = vmatpush.msra.mxu0 0.0
        %1313 = vmatpush.msra.mxu0 0.0
        %1314 = vmatpush.msra.mxu0 %v1103
        %1315 = vmatpush.msra.mxu0 %v1100
        %1316 = vmatmul.f32.gmra.mxu0 %v1260
        %v1317 = vpop.f32.mrf.mxu0
        %v1318 = vadd.f32 0.0, %v1317
        %1319 = vmatmul.f32.gmra.mxu0 %v1263
        %v1320 = vpop.f32.mrf.mxu0
        %v1321 = vadd.f32 0.0, %v1320
        %1322 = vmatmul.f32.gmra.mxu0 %v1266
        %v1323 = vpop.f32.mrf.mxu0
        %v1324 = vadd.f32 0.0, %v1323
        %1325 = vmatmul.f32.gmra.mxu0 %v1269
        %v1326 = vpop.f32.mrf.mxu0
        %v1327 = vadd.f32 0.0, %v1326
        %1328 = vdwg.mxu0
        %v1329 = vadd.f32 %v1214, %v1289
        %v1330 = vadd.f32 %v1243, %v1318
        %v1331 = vadd.f32 %v1217, %v1292
        %v1332 = vadd.f32 %v1246, %v1321
        %v1333 = vadd.f32 %v1220, %v1295
        %v1334 = vadd.f32 %v1249, %v1324
        %v1335 = vadd.f32 %v1223, %v1298
        %v1336 = vadd.f32 %v1252, %v1327
        %v1337 = vld [vmem:[%s8] sm:$0x3]
        %v1339 = vperm.slane %v1337, 0
        %v1340 = vperm.slane %v1337, 1
        %v1343 = vadd.f32 %v1329, %v1339
        %v1344 = vadd.f32 %v1330, %v1340
        %v1345 = vadd.f32 %v1331, %v1339
        %v1346 = vadd.f32 %v1332, %v1340
        %v1347 = vadd.f32 %v1333, %v1339
        %v1348 = vadd.f32 %v1334, %v1340
        %v1349 = vadd.f32 %v1335, %v1339
        %v1350 = vadd.f32 %v1336, %v1340
        %v1351 = vmax.f32 %v1343, 0.0
        %v1352 = vmax.f32 %v1344, 0.0
        %v1353 = vmax.f32 %v1345, 0.0
        %v1354 = vmax.f32 %v1346, 0.0
        %v1355 = vmax.f32 %v1347, 0.0
        %v1356 = vmax.f32 %v1348, 0.0
        %v1357 = vmax.f32 %v1349, 0.0
        %v1358 = vmax.f32 %v1350, 0.0
        %v1359 = vld [vmem:[%s9] sm:$0x3]
        %v1361 = vperm.slane %v1359, 0
        %v1362 = vperm.slane %v1359, 1
        %v1365 = vmul.f32 %v1351, %v1361
        %v1366 = vmul.f32 %v1352, %v1362
        %v1367 = vmul.f32 %v1353, %v1361
        %v1368 = vmul.f32 %v1354, %v1362
        %v1369 = vmul.f32 %v1355, %v1361
        %v1370 = vmul.f32 %v1356, %v1362
        %v1371 = vmul.f32 %v1357, %v1361
        %v1372 = vmul.f32 %v1358, %v1362
        %v1373 = vld [vmem:[%s10] sm:$0x3]
        %v1375 = vperm.slane %v1373, 0
        %v1376 = vperm.slane %v1373, 1
        %v1379 = vadd.f32 %v1365, %v1375
        %v1380 = vadd.f32 %v1366, %v1376
        %v1381 = vadd.f32 %v1367, %v1375
        %v1382 = vadd.f32 %v1368, %v1376
        %v1383 = vadd.f32 %v1369, %v1375
        %v1384 = vadd.f32 %v1370, %v1376
        %v1385 = vadd.f32 %v1371, %v1375
        %v1386 = vadd.f32 %v1372, %v1376
        %1387 = vst [vmem:[%s420] sm:$0xff] %v1379
        %1388 = vst [vmem:[%s420 + $0x8] sm:$0xff] %v1380
        %1389 = vst [vmem:[%s420 + $0x10] sm:$0xff] %v1381
        %1390 = vst [vmem:[%s420 + $0x18] sm:$0xff] %v1382
        %1391 = vst [vmem:[%s420 + $0x20] sm:$0xff] %v1383
        %1392 = vst [vmem:[%s420 + $0x28] sm:$0xff] %v1384
        %1393 = vst [vmem:[%s420 + $0x30] sm:$0xff] %v1385
        %1394 = vst [vmem:[%s420 + $0x38] sm:$0xff] %v1386
        %p1395 = scmp.lt.s32.totalorder %s24, 1
        %s1396 = scalar_select %p1395, %s24, 1
        %s1397 = smul.addr %s1396, 8
        %s1398 = smul.addr %s1397, 8
        %s1399 = scalar_lea.vmem %s11, %s1398
        // Predicated region
        $region73: #{_lambda_.1} parent=63 // pred_check
          %p1400 = pneg %p278
        $region74: #{_lambda_.1} parent=63 // pred_check_branch
          %1402 = sbr.rel (%p1400) target = $region76
        $region75: #{_lambda_.1} parent=63 // pred_region
          _
        $region76: #{_lambda_.1} parent=63 // pred_fallthru
          _
      $region64: #{_lambda_.1} parent=5 // pred_fallthru
        _
      %p1403 = scmp.le.s32.totalorder 2, %s19
      // Predicated region
      $region77: #{_lambda_.1} parent=5 // pred_check
        %p1404 = pneg %p1403
      $region78: #{_lambda_.1} parent=5 // pred_check_branch
        %1406 = sbr.rel (%p1404) target = $region80
      $region79: #{_lambda_.1} parent=5 // pred_region
        %s1407 = ssub.s32 %s19, 2
        // Predicated region
        $region81: #{_lambda_.1} parent=79 // pred_check
          %p1408 = pneg %p284
        $region82: #{_lambda_.1} parent=79 // pred_check_branch
          %1410 = sbr.rel (%p1408) target = $region84
        $region83: #{_lambda_.1} parent=79 // pred_region
          %p1411 = scmp.lt.s32.totalorder %s25, 1
          %s1412 = scalar_select %p1411, %s25, 1
          %s1413 = smul.addr %s1412, 8
          %s1414 = smul.addr %s1413, 8
          %s1415 = scalar_lea.vmem %s11, %s1414
        $region84: #{_lambda_.1} parent=79 // pred_fallthru
          _
      $region80: #{_lambda_.1} parent=5 // pred_fallthru
        _
    $region6: #{_lambda_.1} parent=1 // loop_footer
      %s23 = sadd.s32 1, %s19
    $region7: #{_lambda_.1} parent=1 // loop_footer_branch
      %18 = sbr.rel target = $region3
    $region8: #{_lambda_.1} parent=1 // loop_exit
      _
    %1416 = vsyncpa [#allocation3], 1
    %s1417 = scalar_lea.sflag [#allocation3], 1
    %1418 = vsyncpa %s1417, 1
    %1419 = vsyncpa [#allocation5], 1

</llo_original>
